<compile_context>
chip_gen: v7x
topology: tpu7x:2x2x1
jax: 0.10.0
libtpu: 0.0.40
codegen_flags: <defaults>
</compile_context>

<pallas_src>
import functools

import jax
import jax.numpy as jnp
from jax import lax
from jax.experimental import pallas as pl
from jax.experimental.pallas import tpu as pltpu

SCALE = 0.448
SHIFT = -0.08799999999999997
EPS = 1e-3  # BatchNorm2d eps=0.001


# ----------------------------------------------------- pass 1: conv + stats
def _conv_stats_kernel(p_ref, w_ref, y_ref, s_ref, ss_ref):
    """(64,147) @ (147,TM) -> lane-dense (64,TM) tile + running channel sums."""
    y = jnp.dot(w_ref[...], p_ref[...], preferred_element_type=jnp.float32)
    y_ref[...] = y

    @pl.when((pl.program_id(0) == 0) & (pl.program_id(1) == 0))
    def _init():
        s_ref[...] = jnp.zeros_like(s_ref)
        ss_ref[...] = jnp.zeros_like(ss_ref)

    # Padded (zero) M lanes contribute exactly 0 to both sums.
    s_ref[...] = s_ref[...] + jnp.sum(y, axis=1, keepdims=True)
    ss_ref[...] = ss_ref[...] + jnp.sum(y * y, axis=1, keepdims=True)


# -------------------------------------------------- pass 2: apply batchnorm
def _bn_apply_kernel(y_ref, s_ref, ss_ref, g_ref, b_ref, o_ref, *, inv_count):
    mean = s_ref[...] * inv_count                       # (64, 1)
    var = ss_ref[...] * inv_count - mean * mean         # biased batch variance
    scale = g_ref[...] * lax.rsqrt(var + EPS)           # (64, 1)
    bias = b_ref[...] - mean * scale
    o_ref[...] = y_ref[...] * scale + bias              # broadcast over lanes


# ------------------------------------------------------------------- im2col
def _im2col_transposed(x13, k, s, p):
    """NCHW -> (N, C*k*k, Ho*Wo) patches: K on rows, M on lanes (lane-dense)."""
    N, C, H, W = x13.shape
    Ho = (H + 2 * p - k) // s + 1
    Wo = (W + 2 * p - k) // s + 1
    xp = jnp.pad(x13, ((0, 0), (0, 0), (p, p), (p, p)))
    cols = []
    for kh in range(k):
        for kw in range(k):
            cols.append(
                lax.slice(
                    xp,
                    (0, 0, kh, kw),
                    (N, C, kh + s * (Ho - 1) + 1, kw + s * (Wo - 1) + 1),
                    (1, 1, s, s),
                ))                                      # (N, C, Ho, Wo)
    p5 = jnp.stack(cols, axis=2)                        # (N, C, k*k, Ho, Wo)
    # K index = c*k*k + kh*k + kw  (matches weight.reshape(Cout, -1))
    return p5.reshape(N, C * k * k, Ho * Wo), Ho, Wo


# ------------------------------------------------------------------ forward
@functools.partial(jax.jit, static_argnames=("tm",))
def forward(x6, x4, x12, weight, gamma, beta, *, tm=512):
    N = x6.shape[0]
    Cout, Cin, KH, KW = weight.shape                    # (64, 3, 7, 7)
    K = Cin * KH * KW                                   # 147, kept unpadded

    # x8 folded directly into the concat (removes the standalone scale_add call).
    x13 = jnp.concatenate([x4, x6 * SCALE + SHIFT, x12], axis=1)   # (N, 3, H, W)

    patches, Ho, Wo = _im2col_transposed(x13, k=KH, s=2, p=3)      # (N, 147, Ho*Wo)
    HW = Ho * Wo
    tm = min(tm, -(-HW // 128) * 128)                   # lane-aligned tile, no oversize
    HWp = -(-HW // tm) * tm
    patches = jnp.pad(patches, ((0, 0), (0, 0), (0, HWp - HW)))
    w2d = weight.reshape(Cout, K).astype(jnp.float32)   # (64, 147)

    grid = (N, HWp // tm)

    # ---- pass 1: conv tiles + global per-channel sum / sumsq ---------------
    y, s, ss = pl.pallas_call(
        _conv_stats_kernel,
        out_shape=(
            jax.ShapeDtypeStruct((N, Cout, HWp), jnp.float32),
            jax.ShapeDtypeStruct((Cout, 1), jnp.float32),
            jax.ShapeDtypeStruct((Cout, 1), jnp.float32),
        ),
        grid=grid,
        in_specs=[
            pl.BlockSpec((None, K, tm), lambda n, j: (n, 0, j)),
            pl.BlockSpec((Cout, K), lambda n, j: (0, 0)),
        ],
        out_specs=(
            pl.BlockSpec((None, Cout, tm), lambda n, j: (n, 0, j)),
            pl.BlockSpec((Cout, 1), lambda n, j: (0, 0)),
            pl.BlockSpec((Cout, 1), lambda n, j: (0, 0)),
        ),
        compiler_params=pltpu.CompilerParams(
            dimension_semantics=("arbitrary", "arbitrary"),  # stats reduction
            vmem_limit_bytes=32 * 1024 * 1024,
        ),
    )(patches, w2d)

    # ---- pass 2: normalize (stats finalized in-kernel) ---------------------
    inv_count = 1.0 / float(N * HW)                     # true rows only
    g2 = gamma.reshape(Cout, 1).astype(jnp.float32)
    b2 = beta.reshape(Cout, 1).astype(jnp.float32)
    small_spec = pl.BlockSpec((Cout, 1), lambda n, j: (0, 0))
    out = pl.pallas_call(
        functools.partial(_bn_apply_kernel, inv_count=inv_count),
        out_shape=jax.ShapeDtypeStruct((N, Cout, HWp), jnp.float32),
        grid=grid,
        in_specs=[
            pl.BlockSpec((None, Cout, tm), lambda n, j: (n, 0, j)),
            small_spec, small_spec, small_spec, small_spec,
        ],
        out_specs=pl.BlockSpec((None, Cout, tm), lambda n, j: (n, 0, j)),
        compiler_params=pltpu.CompilerParams(
            dimension_semantics=("parallel", "parallel"),
            vmem_limit_bytes=32 * 1024 * 1024,
        ),
    )(y, s, ss, g2, b2)

    return out[:, :, :HW].reshape(N, Cout, Ho, Wo)      # NCHW, no big transpose


# ---------------------------------------------------------------- reference
def reference(x6, x4, x12, weight, gamma, beta):
    x13 = jnp.concatenate([x4, x6 * SCALE + SHIFT, x12], axis=1)
    y = lax.conv_general_dilated(
        x13, weight, window_strides=(2, 2), padding=((3, 3), (3, 3)),
        dimension_numbers=("NCHW", "OIHW", "NCHW"),
        precision=lax.Precision.HIGHEST,
    )
    mean = jnp.mean(y, axis=(0, 2, 3), keepdims=True)
    var = jnp.mean((y - mean) ** 2, axis=(0, 2, 3), keepdims=True)
    return ((y - mean) * lax.rsqrt(var + EPS) * gamma.reshape(1, -1, 1, 1)
            + beta.reshape(1, -1, 1, 1))


if __name__ == "__main__":
    key = jax.random.PRNGKey(0)
    k1, k2, k3, k4 = jax.random.split(key, 4)

    # Small shapes consistent with the module (original: (1, 1, 224, 224)).
    N, H, W = 2, 36, 36
    x6 = jax.random.normal(k1, (N, 1, H, W), jnp.float32)
    x4 = jax.random.normal(k2, (N, 1, H, W), jnp.float32)
    x12 = jax.random.normal(k3, (N, 1, H, W), jnp.float32)

    # Conv2d(3, 64, 7x7, stride 2, pad 3, bias=False) + BN affine params.
    weight = 0.05 * jax.random.normal(k4, (64, 3, 7, 7), jnp.float32)
    gamma = jnp.linspace(0.5, 1.5, 64, dtype=jnp.float32)
    beta = jnp.linspace(-0.3, 0.3, 64, dtype=jnp.float32)

    # tm=128 so the test exercises multiple M tiles per image plus a padded
    # tail (Ho*Wo = 324 -> 3 tiles of 128 with 60 zero lanes of padding),
    # i.e. the cross-tile stats accumulation and the padded-column handling.
    out = jax.block_until_ready(forward(x6, x4, x12, weight, gamma, beta, tm=128))

    ref = reference(x6, x4, x12, weight, gamma, beta)
    Ho, Wo = H // 2, W // 2
    assert out.shape == (N, 64, Ho, Wo), out.shape
    max_err = float(jnp.max(jnp.abs(out - ref)))
    assert jnp.allclose(out, ref, atol=2e-3, rtol=2e-3), max_err
    print("KERNEL_OK")
</pallas_src>

<mosaic_0001>
module attributes {stable_mosaic.version = 11 : i64} {
  func.func @_conv_stats_kernel(%arg0: i32, %arg1: i32, %arg2: memref<1x147x128xf32, #tpu.memory_space<vmem>>, %arg3: memref<64x147xf32, #tpu.memory_space<vmem>>, %arg4: memref<1x64x128xf32, #tpu.memory_space<vmem>>, %arg5: memref<64x1xf32, #tpu.memory_space<vmem>>, %arg6: memref<64x1xf32, #tpu.memory_space<vmem>>) attributes {dimension_semantics = [#tpu.dimension_semantics<arbitrary>, #tpu.dimension_semantics<arbitrary>], iteration_bounds = array<i64: 2, 3>, scalar_prefetch = 0 : i64, scratch_operands = 0 : i64, tpu.core_type = #tpu.core_type<tc>, window_params = [{transform_indices = @transform_0, window_bounds = array<i64: 1, 147, 128>}, {pipeline_mode = #tpu.pipeline_mode<synchronous>, transform_indices = @transform_1, window_bounds = array<i64: 64, 147>}, {transform_indices = @transform_2, window_bounds = array<i64: 1, 64, 128>}, {pipeline_mode = #tpu.pipeline_mode<synchronous>, transform_indices = @transform_3, window_bounds = array<i64: 64, 1>}, {pipeline_mode = #tpu.pipeline_mode<synchronous>, transform_indices = @transform_4, window_bounds = array<i64: 64, 1>}]} {
    %c0 = arith.constant 0 : index
    %c0_0 = arith.constant 0 : index
    %0 = vector.load %arg3[%c0, %c0_0] : memref<64x147xf32, #tpu.memory_space<vmem>>, vector<64x147xf32>
    %c0_1 = arith.constant 0 : index
    %c0_2 = arith.constant 0 : index
    %c0_3 = arith.constant 0 : index
    %1 = vector.load %arg2[%c0_1, %c0_2, %c0_3] : memref<1x147x128xf32, #tpu.memory_space<vmem>>, vector<1x147x128xf32>
    %2 = vector.shape_cast %1 : vector<1x147x128xf32> to vector<147x128xf32>
    %cst = arith.constant dense<0.000000e+00> : vector<64x128xf32>
    %3 = tpu.matmul %0, %2, %cst {dimension_numbers = #tpu.dot_dimension_numbers<[1], [0], [0], [1], [0, 0, 1, 1], [], []>} : vector<64x147xf32>, vector<147x128xf32>, vector<64x128xf32> -> vector<64x128xf32>
    %c0_4 = arith.constant 0 : index
    %c0_5 = arith.constant 0 : index
    %c0_6 = arith.constant 0 : index
    %4 = vector.load %arg4[%c0_4, %c0_5, %c0_6] : memref<1x64x128xf32, #tpu.memory_space<vmem>>, vector<1x64x128xf32>
    %5 = vector.shape_cast %4 : vector<1x64x128xf32> to vector<64x128xf32>
    %6 = vector.shape_cast %3 : vector<64x128xf32> to vector<1x64x128xf32>
    tpu.vector_store %arg4[%c0_4, %c0_5, %c0_6], %6 {strides = array<i32>} : memref<1x64x128xf32, #tpu.memory_space<vmem>>, vector<1x64x128xf32>,
    %c0_i32 = arith.constant 0 : i32
    %7 = arith.cmpi eq, %arg0, %c0_i32 : i32
    %c0_i32_7 = arith.constant 0 : i32
    %8 = arith.cmpi eq, %arg1, %c0_i32_7 : i32
    %9 = arith.andi %7, %8 : i1
    %10 = arith.extui %9 : i1 to i32
    %c0_i32_8 = arith.constant 0 : i32
    %11 = arith.cmpi ne, %10, %c0_i32_8 : i32
    scf.if %11 {
      %cst_19 = arith.constant 0.000000e+00 : f32
      %23 = vector.broadcast %cst_19 : f32 to vector<64x1xf32>
      %c0_20 = arith.constant 0 : index
      %c0_21 = arith.constant 0 : index
      %24 = vector.load %arg5[%c0_20, %c0_21] : memref<64x1xf32, #tpu.memory_space<vmem>>, vector<64x1xf32>
      tpu.vector_store %arg5[%c0_20, %c0_21], %23 {strides = array<i32>} : memref<64x1xf32, #tpu.memory_space<vmem>>, vector<64x1xf32>,
      %cst_22 = arith.constant 0.000000e+00 : f32
      %25 = vector.broadcast %cst_22 : f32 to vector<64x1xf32>
      %c0_23 = arith.constant 0 : index
      %c0_24 = arith.constant 0 : index
      %26 = vector.load %arg6[%c0_23, %c0_24] : memref<64x1xf32, #tpu.memory_space<vmem>>, vector<64x1xf32>
      tpu.vector_store %arg6[%c0_23, %c0_24], %25 {strides = array<i32>} : memref<64x1xf32, #tpu.memory_space<vmem>>, vector<64x1xf32>,
    } else {
    }
    %c0_9 = arith.constant 0 : index
    %c0_10 = arith.constant 0 : index
    %12 = vector.load %arg5[%c0_9, %c0_10] : memref<64x1xf32, #tpu.memory_space<vmem>>, vector<64x1xf32>
    %cst_11 = arith.constant dense<0.000000e+00> : vector<64xf32>
    %13 = vector.multi_reduction <add>, %3, %cst_11 [1] : vector<64x128xf32> to vector<64xf32>
    %14 = vector.shape_cast %13 : vector<64xf32> to vector<64x1xf32>
    %15 = arith.addf %12, %14 : vector<64x1xf32>
    %c0_12 = arith.constant 0 : index
    %c0_13 = arith.constant 0 : index
    %16 = vector.load %arg5[%c0_12, %c0_13] : memref<64x1xf32, #tpu.memory_space<vmem>>, vector<64x1xf32>
    tpu.vector_store %arg5[%c0_12, %c0_13], %15 {strides = array<i32>} : memref<64x1xf32, #tpu.memory_space<vmem>>, vector<64x1xf32>,
    %c0_14 = arith.constant 0 : index
    %c0_15 = arith.constant 0 : index
    %17 = vector.load %arg6[%c0_14, %c0_15] : memref<64x1xf32, #tpu.memory_space<vmem>>, vector<64x1xf32>
    %18 = arith.mulf %3, %3 : vector<64x128xf32>
    %cst_16 = arith.constant dense<0.000000e+00> : vector<64xf32>
    %19 = vector.multi_reduction <add>, %18, %cst_16 [1] : vector<64x128xf32> to vector<64xf32>
    %20 = vector.shape_cast %19 : vector<64xf32> to vector<64x1xf32>
    %21 = arith.addf %17, %20 : vector<64x1xf32>
    %c0_17 = arith.constant 0 : index
    %c0_18 = arith.constant 0 : index
    %22 = vector.load %arg6[%c0_17, %c0_18] : memref<64x1xf32, #tpu.memory_space<vmem>>, vector<64x1xf32>
    tpu.vector_store %arg6[%c0_17, %c0_18], %21 {strides = array<i32>} : memref<64x1xf32, #tpu.memory_space<vmem>>, vector<64x1xf32>,
    return
  }
  func.func @transform_0(%arg0: i32, %arg1: i32) -> (i32, i32, i32) {
    %c0_i32 = arith.constant 0 : i32
    %c0_i32_0 = arith.constant 0 : i32
    return %arg0, %c0_i32, %arg1 : i32, i32, i32
  }
  func.func @transform_1(%arg0: i32, %arg1: i32) -> (i32, i32) {
    %c0_i32 = arith.constant 0 : i32
    %c0_i32_0 = arith.constant 0 : i32
    %c0_i32_1 = arith.constant 0 : i32
    return %c0_i32, %c0_i32_0 : i32, i32
  }
  func.func @transform_2(%arg0: i32, %arg1: i32) -> (i32, i32, i32) {
    %c0_i32 = arith.constant 0 : i32
    %c0_i32_0 = arith.constant 0 : i32
    return %arg0, %c0_i32, %arg1 : i32, i32, i32
  }
  func.func @transform_3(%arg0: i32, %arg1: i32) -> (i32, i32) {
    %c0_i32 = arith.constant 0 : i32
    %c0_i32_0 = arith.constant 0 : i32
    %c0_i32_1 = arith.constant 0 : i32
    return %c0_i32, %c0_i32_0 : i32, i32
  }
  func.func @transform_4(%arg0: i32, %arg1: i32) -> (i32, i32) {
    %c0_i32 = arith.constant 0 : i32
    %c0_i32_0 = arith.constant 0 : i32
    %c0_i32_1 = arith.constant 0 : i32
    return %c0_i32, %c0_i32_0 : i32, i32
  }
}

module attributes {stable_mosaic.version = 11 : i64} {
  func.func @_bn_apply_kernel(%arg0: i32, %arg1: i32, %arg2: memref<1x64x128xf32, #tpu.memory_space<vmem>>, %arg3: memref<64x1xf32, #tpu.memory_space<vmem>>, %arg4: memref<64x1xf32, #tpu.memory_space<vmem>>, %arg5: memref<64x1xf32, #tpu.memory_space<vmem>>, %arg6: memref<64x1xf32, #tpu.memory_space<vmem>>, %arg7: memref<1x64x128xf32, #tpu.memory_space<vmem>>) attributes {dimension_semantics = [#tpu.dimension_semantics<parallel>, #tpu.dimension_semantics<parallel>], iteration_bounds = array<i64: 2, 3>, scalar_prefetch = 0 : i64, scratch_operands = 0 : i64, tpu.core_type = #tpu.core_type<tc>, window_params = [{transform_indices = @transform_0, window_bounds = array<i64: 1, 64, 128>}, {pipeline_mode = #tpu.pipeline_mode<synchronous>, transform_indices = @transform_1, window_bounds = array<i64: 64, 1>}, {pipeline_mode = #tpu.pipeline_mode<synchronous>, transform_indices = @transform_2, window_bounds = array<i64: 64, 1>}, {pipeline_mode = #tpu.pipeline_mode<synchronous>, transform_indices = @transform_3, window_bounds = array<i64: 64, 1>}, {pipeline_mode = #tpu.pipeline_mode<synchronous>, transform_indices = @transform_4, window_bounds = array<i64: 64, 1>}, {transform_indices = @transform_5, window_bounds = array<i64: 1, 64, 128>}]} {
    %c0 = arith.constant 0 : index
    %c0_0 = arith.constant 0 : index
    %0 = vector.load %arg3[%c0, %c0_0] : memref<64x1xf32, #tpu.memory_space<vmem>>, vector<64x1xf32>
    %cst = arith.constant 0.00154320989 : f32
    %1 = vector.broadcast %cst : f32 to vector<64x1xf32>
    %2 = arith.mulf %0, %1 : vector<64x1xf32>
    %c0_1 = arith.constant 0 : index
    %c0_2 = arith.constant 0 : index
    %3 = vector.load %arg4[%c0_1, %c0_2] : memref<64x1xf32, #tpu.memory_space<vmem>>, vector<64x1xf32>
    %cst_3 = arith.constant 0.00154320989 : f32
    %4 = vector.broadcast %cst_3 : f32 to vector<64x1xf32>
    %5 = arith.mulf %3, %4 : vector<64x1xf32>
    %6 = arith.mulf %2, %2 : vector<64x1xf32>
    %7 = arith.subf %5, %6 : vector<64x1xf32>
    %c0_4 = arith.constant 0 : index
    %c0_5 = arith.constant 0 : index
    %8 = vector.load %arg5[%c0_4, %c0_5] : memref<64x1xf32, #tpu.memory_space<vmem>>, vector<64x1xf32>
    %cst_6 = arith.constant 1.000000e-03 : f32
    %9 = vector.broadcast %cst_6 : f32 to vector<64x1xf32>
    %10 = arith.addf %7, %9 : vector<64x1xf32>
    %11 = math.rsqrt %10 : vector<64x1xf32>
    %12 = arith.mulf %8, %11 : vector<64x1xf32>
    %c0_7 = arith.constant 0 : index
    %c0_8 = arith.constant 0 : index
    %13 = vector.load %arg6[%c0_7, %c0_8] : memref<64x1xf32, #tpu.memory_space<vmem>>, vector<64x1xf32>
    %14 = arith.mulf %2, %12 : vector<64x1xf32>
    %15 = arith.subf %13, %14 : vector<64x1xf32>
    %c0_9 = arith.constant 0 : index
    %c0_10 = arith.constant 0 : index
    %c0_11 = arith.constant 0 : index
    %16 = vector.load %arg2[%c0_9, %c0_10, %c0_11] : memref<1x64x128xf32, #tpu.memory_space<vmem>>, vector<1x64x128xf32>
    %17 = vector.shape_cast %16 : vector<1x64x128xf32> to vector<64x128xf32>
    %18 = vector.broadcast %12 : vector<64x1xf32> to vector<64x128xf32>
    %19 = arith.mulf %17, %18 : vector<64x128xf32>
    %20 = vector.broadcast %15 : vector<64x1xf32> to vector<64x128xf32>
    %21 = arith.addf %19, %20 : vector<64x128xf32>
    %c0_12 = arith.constant 0 : index
    %c0_13 = arith.constant 0 : index
    %c0_14 = arith.constant 0 : index
    %22 = vector.load %arg7[%c0_12, %c0_13, %c0_14] : memref<1x64x128xf32, #tpu.memory_space<vmem>>, vector<1x64x128xf32>
    %23 = vector.shape_cast %22 : vector<1x64x128xf32> to vector<64x128xf32>
    %24 = vector.shape_cast %21 : vector<64x128xf32> to vector<1x64x128xf32>
    tpu.vector_store %arg7[%c0_12, %c0_13, %c0_14], %24 {strides = array<i32>} : memref<1x64x128xf32, #tpu.memory_space<vmem>>, vector<1x64x128xf32>,
    return
  }
  func.func @transform_0(%arg0: i32, %arg1: i32) -> (i32, i32, i32) {
    %c0_i32 = arith.constant 0 : i32
    %c0_i32_0 = arith.constant 0 : i32
    return %arg0, %c0_i32, %arg1 : i32, i32, i32
  }
  func.func @transform_1(%arg0: i32, %arg1: i32) -> (i32, i32) {
    %c0_i32 = arith.constant 0 : i32
    %c0_i32_0 = arith.constant 0 : i32
    %c0_i32_1 = arith.constant 0 : i32
    return %c0_i32, %c0_i32_0 : i32, i32
  }
  func.func @transform_2(%arg0: i32, %arg1: i32) -> (i32, i32) {
    %c0_i32 = arith.constant 0 : i32
    %c0_i32_0 = arith.constant 0 : i32
    %c0_i32_1 = arith.constant 0 : i32
    return %c0_i32, %c0_i32_0 : i32, i32
  }
  func.func @transform_3(%arg0: i32, %arg1: i32) -> (i32, i32) {
    %c0_i32 = arith.constant 0 : i32
    %c0_i32_0 = arith.constant 0 : i32
    %c0_i32_1 = arith.constant 0 : i32
    return %c0_i32, %c0_i32_0 : i32, i32
  }
  func.func @transform_4(%arg0: i32, %arg1: i32) -> (i32, i32) {
    %c0_i32 = arith.constant 0 : i32
    %c0_i32_0 = arith.constant 0 : i32
    %c0_i32_1 = arith.constant 0 : i32
    return %c0_i32, %c0_i32_0 : i32, i32
  }
  func.func @transform_5(%arg0: i32, %arg1: i32) -> (i32, i32, i32) {
    %c0_i32 = arith.constant 0 : i32
    %c0_i32_0 = arith.constant 0 : i32
    return %arg0, %c0_i32, %arg1 : i32, i32, i32
  }
}

</mosaic_0001>

<llo_original>
// kernel: forward.3
$region0: #{forward.3}
  #allocation0 [shape = 'u32[]', space=smem, size = 0x4, offset = 0x4, fixed_abs, tag = 'smem constant byte address 0x4 - core index']
  #allocation1 [shape = 'u32[144,128]{1,0:T(1,128)}', space=vmem, size = 0x12000, scoped, tag = 'internal scratch']
  %s0 = inlined_call_operand.vmem [shape: f32[2,64,384], index: 0, kind: input, shape index: {}]
  %s1 = inlined_call_operand.vmem [shape: f32[64,1], index: 1, kind: input, shape index: {}]
  %s2 = inlined_call_operand.vmem [shape: f32[64,1], index: 2, kind: input, shape index: {}]
  %s3 = inlined_call_operand.vmem [shape: f32[64,1], index: 3, kind: input, shape index: {}]
  %s4 = inlined_call_operand.vmem [shape: f32[64,1], index: 4, kind: input, shape index: {}]
  %s5 = inlined_call_operand.vmem [shape: f32[2,64,384], index: 5, kind: output, shape index: {}]
  %s6 = sld [smem:[#allocation0]]
  $region125: #{forward.3} parent=0
    _
  %s8 = ssub.s32 1, %s6
  %s9 = scalar_select 0, %s8, %s6
  $region1: #{forward.3} parent=0
    #allocation2 [shape = 'u8[65536]{0}', space=vmem, size = 0x10000, scoped, tag = 'input window, operand 0']
    #allocation3 [shape = 'u8[65536]{0}', space=vmem, size = 0x10000, scoped, tag = 'output window, operand 0']
    loop: start=0, step=1, limit=8
    $region2: #{forward.3} parent=1 // loop_pre_header
      _
    $region3: #{forward.3} parent=1 // loop_header
      %s11 = sphi 0, %s15
      %p12 = scmp.ge.s32.totalorder %s11, 8
      %s18 = sphi 0, %s30
      %s19 = sphi 0, %s26
      %s20 = sphi 0, %s18
      %s21 = sphi 0, %s19
      %s22 = sphi 0, %s20
      %s23 = sphi 0, %s21
      %s35 = sphi 0, %s37
      %s38 = sphi 0, %s35
      %s39 = sphi 0, %s38
      %s55 = sphi 0, %s39
      %s59 = sphi 0, %s59
      %s61 = sphi 0, %s59
      %s62 = sphi 0, %s61
      %s76 = sphi 0, %s62
      %s80 = sphi 0, %s80
      %s82 = sphi 0, %s80
      %s83 = sphi 0, %s82
      %s97 = sphi 0, %s83
      %s101 = sphi 0, %s101
      %s103 = sphi 0, %s101
      %s104 = sphi 0, %s103
      %s118 = sphi 0, %s104
      %s122 = sphi 0, %s122
      %s124 = sphi 0, %s122
      %s125 = sphi 0, %s124
      %s139 = sphi 0, %s125
      %s147 = sphi 0, %s149
      %s150 = sphi 0, %s147
      %s151 = sphi 0, %s150
      %s167 = sphi 0, %s151
    $region4: #{forward.3} parent=1 // loop_header_branch
      %14 = sbr.rel (%p12) target = $region8
    $region5: #{forward.3} parent=1 // loop_body
      %s16 = ssub.s32 %s11, 1
      %s17 = ssub.s32 %s11, 2
      %s24 = sadd.s32 1, %s19
      %p25 = scmp.ge.s32.totalorder %s24, 3
      %s26 = scalar_select %p25, 0, %s24
      %s27 = sadd.s32 1, %s18
      %s28 = scalar_select %p25, %s27, %s18
      %p29 = scmp.ge.s32.totalorder %s28, 2
      %s30 = scalar_select %p29, 0, %s28
      %s31 = ssub.s32 %s18, %s30
      %s32 = ssub.s32 %s19, %s26
      %s33 = sor.u32 %s31, %s32
      %p34 = scmp.eq.s32.totalorder %s33, 0
      %s36 = sadd.s32 %s35, 1
      %s37 = scalar_select %p34, %s35, %s36
      %p40 = pneg %p34
      %p41 = scmp.eq.s32.totalorder %s11, 5
      %p42 = por %p40, %p41
      %p43 = scmp.ne.s32.totalorder %s35, %s38
      %p44 = scmp.eq.s32.totalorder %s11, 0
      %p45 = por %p43, %p44
      %p46 = scmp.ne.s32.totalorder %s35, %s38
      %p47 = scmp.eq.s32.totalorder %s16, 5
      %p48 = por %p46, %p47
      %p49 = scmp.ne.s32.totalorder %s38, %s39
      %p50 = scmp.eq.s32.totalorder %s16, 0
      %p51 = por %p49, %p50
      %p52 = scmp.ne.s32.totalorder %s38, %s39
      %p53 = scmp.eq.s32.totalorder %s17, 5
      %p54 = por %p52, %p53
      %p56 = scmp.ne.s32.totalorder %s39, %s55
      %p57 = scmp.eq.s32.totalorder %s17, 0
      %p58 = por %p56, %p57
      %s60 = sadd.s32 %s59, 1
      %p63 = scmp.eq.s32.totalorder %s11, 5
      %p64 = scmp.ne.s32.totalorder %s59, %s61
      %p65 = scmp.eq.s32.totalorder %s11, 0
      %p66 = por %p64, %p65
      %p67 = scmp.ne.s32.totalorder %s59, %s61
      %p68 = scmp.eq.s32.totalorder %s16, 5
      %p69 = por %p67, %p68
      %p70 = scmp.ne.s32.totalorder %s61, %s62
      %p71 = scmp.eq.s32.totalorder %s16, 0
      %p72 = por %p70, %p71
      %p73 = scmp.ne.s32.totalorder %s61, %s62
      %p74 = scmp.eq.s32.totalorder %s17, 5
      %p75 = por %p73, %p74
      %p77 = scmp.ne.s32.totalorder %s62, %s76
      %p78 = scmp.eq.s32.totalorder %s17, 0
      %p79 = por %p77, %p78
      %s81 = sadd.s32 %s80, 1
      %p84 = scmp.eq.s32.totalorder %s11, 5
      %p85 = scmp.ne.s32.totalorder %s80, %s82
      %p86 = scmp.eq.s32.totalorder %s11, 0
      %p87 = por %p85, %p86
      %p88 = scmp.ne.s32.totalorder %s80, %s82
      %p89 = scmp.eq.s32.totalorder %s16, 5
      %p90 = por %p88, %p89
      %p91 = scmp.ne.s32.totalorder %s82, %s83
      %p92 = scmp.eq.s32.totalorder %s16, 0
      %p93 = por %p91, %p92
      %p94 = scmp.ne.s32.totalorder %s82, %s83
      %p95 = scmp.eq.s32.totalorder %s17, 5
      %p96 = por %p94, %p95
      %p98 = scmp.ne.s32.totalorder %s83, %s97
      %p99 = scmp.eq.s32.totalorder %s17, 0
      %p100 = por %p98, %p99
      %s102 = sadd.s32 %s101, 1
      %p105 = scmp.eq.s32.totalorder %s11, 5
      %p106 = scmp.ne.s32.totalorder %s101, %s103
      %p107 = scmp.eq.s32.totalorder %s11, 0
      %p108 = por %p106, %p107
      %p109 = scmp.ne.s32.totalorder %s101, %s103
      %p110 = scmp.eq.s32.totalorder %s16, 5
      %p111 = por %p109, %p110
      %p112 = scmp.ne.s32.totalorder %s103, %s104
      %p113 = scmp.eq.s32.totalorder %s16, 0
      %p114 = por %p112, %p113
      %p115 = scmp.ne.s32.totalorder %s103, %s104
      %p116 = scmp.eq.s32.totalorder %s17, 5
      %p117 = por %p115, %p116
      %p119 = scmp.ne.s32.totalorder %s104, %s118
      %p120 = scmp.eq.s32.totalorder %s17, 0
      %p121 = por %p119, %p120
      %s123 = sadd.s32 %s122, 1
      %p126 = scmp.eq.s32.totalorder %s11, 5
      %p127 = scmp.ne.s32.totalorder %s122, %s124
      %p128 = scmp.eq.s32.totalorder %s11, 0
      %p129 = por %p127, %p128
      %p130 = scmp.ne.s32.totalorder %s122, %s124
      %p131 = scmp.eq.s32.totalorder %s16, 5
      %p132 = por %p130, %p131
      %p133 = scmp.ne.s32.totalorder %s124, %s125
      %p134 = scmp.eq.s32.totalorder %s16, 0
      %p135 = por %p133, %p134
      %p136 = scmp.ne.s32.totalorder %s124, %s125
      %p137 = scmp.eq.s32.totalorder %s17, 5
      %p138 = por %p136, %p137
      %p140 = scmp.ne.s32.totalorder %s125, %s139
      %p141 = scmp.eq.s32.totalorder %s17, 0
      %p142 = por %p140, %p141
      %s143 = ssub.s32 %s18, %s30
      %s144 = ssub.s32 %s19, %s26
      %s145 = sor.u32 %s143, %s144
      %p146 = scmp.eq.s32.totalorder %s145, 0
      %s148 = sadd.s32 %s147, 1
      %s149 = scalar_select %p146, %s147, %s148
      %p152 = pneg %p146
      %p153 = scmp.eq.s32.totalorder %s11, 5
      %p154 = por %p152, %p153
      %p155 = scmp.ne.s32.totalorder %s147, %s150
      %p156 = scmp.eq.s32.totalorder %s11, 0
      %p157 = por %p155, %p156
      %p158 = scmp.ne.s32.totalorder %s147, %s150
      %p159 = scmp.eq.s32.totalorder %s16, 5
      %p160 = por %p158, %p159
      %p161 = scmp.ne.s32.totalorder %s150, %s151
      %p162 = scmp.eq.s32.totalorder %s16, 0
      %p163 = por %p161, %p162
      %p164 = scmp.ne.s32.totalorder %s150, %s151
      %p165 = scmp.eq.s32.totalorder %s17, 5
      %p166 = por %p164, %p165
      %p168 = scmp.ne.s32.totalorder %s151, %s167
      %p169 = scmp.eq.s32.totalorder %s17, 0
      %p170 = por %p168, %p169
      %p171 = scmp.le.s32.totalorder 1, %s11
      %p172 = scmp.lt.s32.totalorder %s11, 7
      %p173 = pnand %p171, %p172
      %p174 = pneg %p173
      // Predicated region
      $region9: #{forward.3} parent=5 // pred_check
        _
      $region10: #{forward.3} parent=5 // pred_check_branch
        %176 = sbr.rel (%p173) target = $region12
      $region11: #{forward.3} parent=5 // pred_region
        %s177 = ssub.s32 %s11, 1
        // Predicated region
        $region13: #{forward.3} parent=11 // pred_check
          %p178 = pneg %p72
        $region14: #{forward.3} parent=11 // pred_check_branch
          %180 = sbr.rel (%p178) target = $region16
        $region15: #{forward.3} parent=11 // pred_region
          _
        $region16: #{forward.3} parent=11 // pred_fallthru
          _
        // Predicated region
        $region17: #{forward.3} parent=11 // pred_check
          %p181 = pneg %p93
        $region18: #{forward.3} parent=11 // pred_check_branch
          %183 = sbr.rel (%p181) target = $region20
        $region19: #{forward.3} parent=11 // pred_region
          _
        $region20: #{forward.3} parent=11 // pred_fallthru
          _
        // Predicated region
        $region21: #{forward.3} parent=11 // pred_check
          %p184 = pneg %p114
        $region22: #{forward.3} parent=11 // pred_check_branch
          %186 = sbr.rel (%p184) target = $region24
        $region23: #{forward.3} parent=11 // pred_region
          _
        $region24: #{forward.3} parent=11 // pred_fallthru
          _
        // Predicated region
        $region25: #{forward.3} parent=11 // pred_check
          %p187 = pneg %p135
        $region26: #{forward.3} parent=11 // pred_check_branch
          %189 = sbr.rel (%p187) target = $region28
        $region27: #{forward.3} parent=11 // pred_region
          _
        $region28: #{forward.3} parent=11 // pred_fallthru
          _
      $region12: #{forward.3} parent=5 // pred_fallthru
        _
      %p190 = scmp.lt.s32.totalorder %s11, 6
      // Predicated region
      $region29: #{forward.3} parent=5 // pred_check
        %p191 = pneg %p190
      $region30: #{forward.3} parent=5 // pred_check_branch
        %193 = sbr.rel (%p191) target = $region32
      $region31: #{forward.3} parent=5 // pred_region
        // Predicated region
        $region33: #{forward.3} parent=31 // pred_check
          %p194 = pneg %p45
        $region34: #{forward.3} parent=31 // pred_check_branch
          %196 = sbr.rel (%p194) target = $region36
        $region35: #{forward.3} parent=31 // pred_region
          %s197 = sand.u32 %s35, 1
          %s198 = sand.u32 %s35, 1
          %s199 = smul.addr %s198, 64
          %s200 = scalar_lea.vmem [#allocation2], %s199
          %s201 = smul.addr %s18, 24
          %s202 = sadd.s32 %s19, %s201
          %s203 = smul.addr %s202, 8
          %s204 = scalar_lea.vmem %s0, %s203
          // Predicated region
          $region37: #{forward.3} parent=35 // pred_check
            _
          $region38: #{forward.3} parent=35 // pred_check_branch
            %206 = sbr.rel (0) target = $region40
          $region39: #{forward.3} parent=35 // pred_region
            // Predicated region
            $region41: #{forward.3} parent=39 // pred_check
              _
            $region42: #{forward.3} parent=39 // pred_check_branch
              %208 = sbr.rel (0) target = $region44
            $region43: #{forward.3} parent=39 // pred_region
              // Predicated region
              $region56: #{forward.3} parent=43 // pred_check
                _
              $region57: #{forward.3} parent=43 // pred_check_branch
                %237 = sbr.rel (0) target = $region59
              $region58: #{forward.3} parent=43 // pred_region
                loop: start=0, step=1, limit=1
                $region60: #{forward.3} parent=58 // loop_pre_header
                  _
                $region61: #{forward.3} parent=58 // loop_header
                  %s239 = sphi 0, %s243
                  %p240 = scmp.ge.s32.totalorder %s239, 1
                  %s244 = sphi %s204, %s204
                  %s245 = sphi %s200, %s200
                $region62: #{forward.3} parent=58 // loop_header_branch
                  %242 = sbr.rel (%p240) target = $region66
                $region63: #{forward.3} parent=58 // loop_body
                  %v246 = vld [vmem:[%s244] sm:$0xff]
                  %247 = vst [vmem:[%s245] sm:$0xff] %v246
                  %v248 = vld [vmem:[%s244 + $0x18] sm:$0xff]
                  %249 = vst [vmem:[%s245 + $0x8] sm:$0xff] %v248
                  %v250 = vld [vmem:[%s244 + $0x30] sm:$0xff]
                  %251 = vst [vmem:[%s245 + $0x10] sm:$0xff] %v250
                  %v252 = vld [vmem:[%s244 + $0x48] sm:$0xff]
                  %253 = vst [vmem:[%s245 + $0x18] sm:$0xff] %v252
                  %v254 = vld [vmem:[%s244 + $0x60] sm:$0xff]
                  %255 = vst [vmem:[%s245 + $0x20] sm:$0xff] %v254
                  %v256 = vld [vmem:[%s244 + $0x78] sm:$0xff]
                  %257 = vst [vmem:[%s245 + $0x28] sm:$0xff] %v256
                  %v258 = vld [vmem:[%s244 + $0x90] sm:$0xff]
                  %259 = vst [vmem:[%s245 + $0x30] sm:$0xff] %v258
                  %v260 = vld [vmem:[%s244 + $0xa8] sm:$0xff]
                  %261 = vst [vmem:[%s245 + $0x38] sm:$0xff] %v260
                $region64: #{forward.3} parent=58 // loop_footer
                  %s243 = sadd.s32 1, %s239
                $region65: #{forward.3} parent=58 // loop_footer_branch
                  %238 = sbr.rel target = $region61
                $region66: #{forward.3} parent=58 // loop_exit
                  _
              $region59: #{forward.3} parent=43 // pred_fallthru
                _
              // Predicated region
              $region67: #{forward.3} parent=43 // pred_check
                _
              $region68: #{forward.3} parent=43 // pred_check_branch
                %263 = sbr.rel target = $region70
              $region69: #{forward.3} parent=43 // pred_region
                _
              $region70: #{forward.3} parent=43 // pred_fallthru
                _
            $region44: #{forward.3} parent=39 // pred_fallthru
              _
            // Predicated region
            $region45: #{forward.3} parent=39 // pred_check
              _
            $region46: #{forward.3} parent=39 // pred_check_branch
              %210 = sbr.rel target = $region48
            $region47: #{forward.3} parent=39 // pred_region
              loop: start=0, step=1, limit=1
              $region49: #{forward.3} parent=47 // loop_pre_header
                _
              $region50: #{forward.3} parent=47 // loop_header
                %s213 = sphi 0, %s217
                %p214 = scmp.ge.s32.totalorder %s213, 1
                %s218 = sphi %s204, %s204
                %s219 = sphi %s200, %s200
              $region51: #{forward.3} parent=47 // loop_header_branch
                %216 = sbr.rel (%p214) target = $region55
              $region52: #{forward.3} parent=47 // loop_body
                %v220 = vld [vmem:[%s218] sm:$0xff]
                %221 = vst [vmem:[%s219] sm:$0xff] %v220
                %v222 = vld [vmem:[%s218 + $0x18] sm:$0xff]
                %223 = vst [vmem:[%s219 + $0x8] sm:$0xff] %v222
                %v224 = vld [vmem:[%s218 + $0x30] sm:$0xff]
                %225 = vst [vmem:[%s219 + $0x10] sm:$0xff] %v224
                %v226 = vld [vmem:[%s218 + $0x48] sm:$0xff]
                %227 = vst [vmem:[%s219 + $0x18] sm:$0xff] %v226
                %v228 = vld [vmem:[%s218 + $0x60] sm:$0xff]
                %229 = vst [vmem:[%s219 + $0x20] sm:$0xff] %v228
                %v230 = vld [vmem:[%s218 + $0x78] sm:$0xff]
                %231 = vst [vmem:[%s219 + $0x28] sm:$0xff] %v230
                %v232 = vld [vmem:[%s218 + $0x90] sm:$0xff]
                %233 = vst [vmem:[%s219 + $0x30] sm:$0xff] %v232
                %v234 = vld [vmem:[%s218 + $0xa8] sm:$0xff]
                %235 = vst [vmem:[%s219 + $0x38] sm:$0xff] %v234
              $region53: #{forward.3} parent=47 // loop_footer
                %s217 = sadd.s32 1, %s213
              $region54: #{forward.3} parent=47 // loop_footer_branch
                %212 = sbr.rel target = $region50
              $region55: #{forward.3} parent=47 // loop_exit
                _
            $region48: #{forward.3} parent=39 // pred_fallthru
              _
          $region40: #{forward.3} parent=35 // pred_fallthru
            _
          %264 = vnop
        $region36: #{forward.3} parent=31 // pred_fallthru
          _
      $region32: #{forward.3} parent=5 // pred_fallthru
        _
      %p265 = scmp.le.s32.totalorder 1, %s11
      %p266 = scmp.lt.s32.totalorder %s11, 7
      %p267 = pnand %p265, %p266
      %p268 = pneg %p267
      // Predicated region
      $region71: #{forward.3} parent=5 // pred_check
        _
      $region72: #{forward.3} parent=5 // pred_check_branch
        %270 = sbr.rel (%p267) target = $region74
      $region73: #{forward.3} parent=5 // pred_region
        %s271 = ssub.s32 %s11, 1
        %s272 = sand.u32 %s38, 1
        %s273 = sand.u32 %s38, 1
        %s274 = smul.addr %s273, 64
        %s275 = scalar_lea.vmem [#allocation2], %s274
        // Predicated region
        $region75: #{forward.3} parent=73 // pred_check
          %p276 = pneg %p51
        $region76: #{forward.3} parent=73 // pred_check_branch
          %278 = sbr.rel (%p276) target = $region78
        $region77: #{forward.3} parent=73 // pred_region
          _
        $region78: #{forward.3} parent=73 // pred_fallthru
          _
        %s279 = sand.u32 %s38, 1
        %s280 = sand.u32 %s38, 1
        %s281 = smul.addr %s280, 64
        %s282 = scalar_lea.vmem [#allocation2], %s281
        %p283 = pneg %p51
        %p284 = pneg %p48
        %p285 = pneg %p72
        %p286 = pneg %p69
        %p287 = pneg %p93
        %p288 = pneg %p90
        %p289 = pneg %p114
        %p290 = pneg %p111
        %p291 = pneg %p135
        %p292 = pneg %p132
        %p293 = pneg %p163
        %p294 = pneg %p160
        %s295 = sand.u32 %s150, 1
        %s296 = sand.u32 %s150, 1
        %s297 = smul.addr %s296, 64
        %s298 = scalar_lea.vmem [#allocation3], %s297
        %v299 = vld [vmem:[%s1] sm:$0xff]
        %v300 = vld [vmem:[%s1 + $0x8] sm:$0xff]
        %v301 = vld [vmem:[%s1 + $0x10] sm:$0xff]
        %v302 = vld [vmem:[%s1 + $0x18] sm:$0xff]
        %v303 = vld [vmem:[%s1 + $0x20] sm:$0xff]
        %v304 = vld [vmem:[%s1 + $0x28] sm:$0xff]
        %v305 = vld [vmem:[%s1 + $0x30] sm:$0xff]
        %v306 = vld [vmem:[%s1 + $0x38] sm:$0xff]
        %v307 = vmul.f32 %v299, 0.0015432099
        %v308 = vmul.f32 %v300, 0.0015432099
        %v309 = vmul.f32 %v301, 0.0015432099
        %v310 = vmul.f32 %v302, 0.0015432099
        %v311 = vmul.f32 %v303, 0.0015432099
        %v312 = vmul.f32 %v304, 0.0015432099
        %v313 = vmul.f32 %v305, 0.0015432099
        %v314 = vmul.f32 %v306, 0.0015432099
        %v315 = vld [vmem:[%s2] sm:$0xff]
        %v316 = vld [vmem:[%s2 + $0x8] sm:$0xff]
        %v317 = vld [vmem:[%s2 + $0x10] sm:$0xff]
        %v318 = vld [vmem:[%s2 + $0x18] sm:$0xff]
        %v319 = vld [vmem:[%s2 + $0x20] sm:$0xff]
        %v320 = vld [vmem:[%s2 + $0x28] sm:$0xff]
        %v321 = vld [vmem:[%s2 + $0x30] sm:$0xff]
        %v322 = vld [vmem:[%s2 + $0x38] sm:$0xff]
        %v323 = vmul.f32 %v315, 0.0015432099
        %v324 = vmul.f32 %v316, 0.0015432099
        %v325 = vmul.f32 %v317, 0.0015432099
        %v326 = vmul.f32 %v318, 0.0015432099
        %v327 = vmul.f32 %v319, 0.0015432099
        %v328 = vmul.f32 %v320, 0.0015432099
        %v329 = vmul.f32 %v321, 0.0015432099
        %v330 = vmul.f32 %v322, 0.0015432099
        %v331 = vmul.f32 %v307, %v307
        %v332 = vmul.f32 %v308, %v308
        %v333 = vmul.f32 %v309, %v309
        %v334 = vmul.f32 %v310, %v310
        %v335 = vmul.f32 %v311, %v311
        %v336 = vmul.f32 %v312, %v312
        %v337 = vmul.f32 %v313, %v313
        %v338 = vmul.f32 %v314, %v314
        %v339 = vsub.f32 %v323, %v331
        %v340 = vsub.f32 %v324, %v332
        %v341 = vsub.f32 %v325, %v333
        %v342 = vsub.f32 %v326, %v334
        %v343 = vsub.f32 %v327, %v335
        %v344 = vsub.f32 %v328, %v336
        %v345 = vsub.f32 %v329, %v337
        %v346 = vsub.f32 %v330, %v338
        %v347 = vld [vmem:[%s3] sm:$0xff]
        %v348 = vld [vmem:[%s3 + $0x8] sm:$0xff]
        %v349 = vld [vmem:[%s3 + $0x10] sm:$0xff]
        %v350 = vld [vmem:[%s3 + $0x18] sm:$0xff]
        %v351 = vld [vmem:[%s3 + $0x20] sm:$0xff]
        %v352 = vld [vmem:[%s3 + $0x28] sm:$0xff]
        %v353 = vld [vmem:[%s3 + $0x30] sm:$0xff]
        %v354 = vld [vmem:[%s3 + $0x38] sm:$0xff]
        %v355 = vadd.f32 %v339, 0.001
        %v356 = vadd.f32 %v340, 0.001
        %v357 = vadd.f32 %v341, 0.001
        %v358 = vadd.f32 %v342, 0.001
        %v359 = vadd.f32 %v343, 0.001
        %v360 = vadd.f32 %v344, 0.001
        %v361 = vadd.f32 %v345, 0.001
        %v362 = vadd.f32 %v346, 0.001
        %v363 = vrsqrt.pop %v355
        %v364 = vrsqrt.pop %v356
        %v365 = vrsqrt.pop %v357
        %v366 = vrsqrt.pop %v358
        %v367 = vrsqrt.pop %v359
        %v368 = vrsqrt.pop %v360
        %v369 = vrsqrt.pop %v361
        %v370 = vrsqrt.pop %v362
        %v371 = vmul.f32 %v347, %v363
        %v372 = vmul.f32 %v348, %v364
        %v373 = vmul.f32 %v349, %v365
        %v374 = vmul.f32 %v350, %v366
        %v375 = vmul.f32 %v351, %v367
        %v376 = vmul.f32 %v352, %v368
        %v377 = vmul.f32 %v353, %v369
        %v378 = vmul.f32 %v354, %v370
        %v379 = vld [vmem:[%s4] sm:$0xff]
        %v380 = vld [vmem:[%s4 + $0x8] sm:$0xff]
        %v381 = vld [vmem:[%s4 + $0x10] sm:$0xff]
        %v382 = vld [vmem:[%s4 + $0x18] sm:$0xff]
        %v383 = vld [vmem:[%s4 + $0x20] sm:$0xff]
        %v384 = vld [vmem:[%s4 + $0x28] sm:$0xff]
        %v385 = vld [vmem:[%s4 + $0x30] sm:$0xff]
        %v386 = vld [vmem:[%s4 + $0x38] sm:$0xff]
        %v387 = vmul.f32 %v307, %v371
        %v388 = vmul.f32 %v308, %v372
        %v389 = vmul.f32 %v309, %v373
        %v390 = vmul.f32 %v310, %v374
        %v391 = vmul.f32 %v311, %v375
        %v392 = vmul.f32 %v312, %v376
        %v393 = vmul.f32 %v313, %v377
        %v394 = vmul.f32 %v314, %v378
        %v395 = vsub.f32 %v379, %v387
        %v396 = vsub.f32 %v380, %v388
        %v397 = vsub.f32 %v381, %v389
        %v398 = vsub.f32 %v382, %v390
        %v399 = vsub.f32 %v383, %v391
        %v400 = vsub.f32 %v384, %v392
        %v401 = vsub.f32 %v385, %v393
        %v402 = vsub.f32 %v386, %v394
        %v403 = vld [vmem:[%s275] sm:$0xff]
        %v404 = vld [vmem:[%s275 + $0x8] sm:$0xff]
        %v405 = vld [vmem:[%s275 + $0x10] sm:$0xff]
        %v406 = vld [vmem:[%s275 + $0x18] sm:$0xff]
        %v407 = vld [vmem:[%s275 + $0x20] sm:$0xff]
        %v408 = vld [vmem:[%s275 + $0x28] sm:$0xff]
        %v409 = vld [vmem:[%s275 + $0x30] sm:$0xff]
        %v410 = vld [vmem:[%s275 + $0x38] sm:$0xff]
        %412 = vset.pattern.permute.xlu0 0
        %413 = vperm.xlu0 %412, %v371
        %v414 = vpop.permute.xlu0 %413
        %417 = vset.pattern.permute.xlu0 0
        %418 = vperm.xlu0 %417, %v372
        %v419 = vpop.permute.xlu0 %418
        %422 = vset.pattern.permute.xlu0 0
        %423 = vperm.xlu0 %422, %v373
        %v424 = vpop.permute.xlu0 %423
        %427 = vset.pattern.permute.xlu0 0
        %428 = vperm.xlu0 %427, %v374
        %v429 = vpop.permute.xlu0 %428
        %432 = vset.pattern.permute.xlu0 0
        %433 = vperm.xlu0 %432, %v375
        %v434 = vpop.permute.xlu0 %433
        %437 = vset.pattern.permute.xlu0 0
        %438 = vperm.xlu0 %437, %v376
        %v439 = vpop.permute.xlu0 %438
        %442 = vset.pattern.permute.xlu0 0
        %443 = vperm.xlu0 %442, %v377
        %v444 = vpop.permute.xlu0 %443
        %447 = vset.pattern.permute.xlu0 0
        %448 = vperm.xlu0 %447, %v378
        %v449 = vpop.permute.xlu0 %448
        %v451 = vmul.f32 %v403, %v414
        %v452 = vmul.f32 %v404, %v419
        %v453 = vmul.f32 %v405, %v424
        %v454 = vmul.f32 %v406, %v429
        %v455 = vmul.f32 %v407, %v434
        %v456 = vmul.f32 %v408, %v439
        %v457 = vmul.f32 %v409, %v444
        %v458 = vmul.f32 %v410, %v449
        %460 = vset.pattern.permute.xlu0 0
        %461 = vperm.xlu0 %460, %v395
        %v462 = vpop.permute.xlu0 %461
        %465 = vset.pattern.permute.xlu0 0
        %466 = vperm.xlu0 %465, %v396
        %v467 = vpop.permute.xlu0 %466
        %470 = vset.pattern.permute.xlu0 0
        %471 = vperm.xlu0 %470, %v397
        %v472 = vpop.permute.xlu0 %471
        %475 = vset.pattern.permute.xlu0 0
        %476 = vperm.xlu0 %475, %v398
        %v477 = vpop.permute.xlu0 %476
        %480 = vset.pattern.permute.xlu0 0
        %481 = vperm.xlu0 %480, %v399
        %v482 = vpop.permute.xlu0 %481
        %485 = vset.pattern.permute.xlu0 0
        %486 = vperm.xlu0 %485, %v400
        %v487 = vpop.permute.xlu0 %486
        %490 = vset.pattern.permute.xlu0 0
        %491 = vperm.xlu0 %490, %v401
        %v492 = vpop.permute.xlu0 %491
        %495 = vset.pattern.permute.xlu0 0
        %496 = vperm.xlu0 %495, %v402
        %v497 = vpop.permute.xlu0 %496
        %v499 = vadd.f32 %v451, %v462
        %v500 = vadd.f32 %v452, %v467
        %v501 = vadd.f32 %v453, %v472
        %v502 = vadd.f32 %v454, %v477
        %v503 = vadd.f32 %v455, %v482
        %v504 = vadd.f32 %v456, %v487
        %v505 = vadd.f32 %v457, %v492
        %v506 = vadd.f32 %v458, %v497
        %507 = vst [vmem:[%s298] sm:$0xff] %v499
        %508 = vst [vmem:[%s298 + $0x8] sm:$0xff] %v500
        %509 = vst [vmem:[%s298 + $0x10] sm:$0xff] %v501
        %510 = vst [vmem:[%s298 + $0x18] sm:$0xff] %v502
        %511 = vst [vmem:[%s298 + $0x20] sm:$0xff] %v503
        %512 = vst [vmem:[%s298 + $0x28] sm:$0xff] %v504
        %513 = vst [vmem:[%s298 + $0x30] sm:$0xff] %v505
        %514 = vst [vmem:[%s298 + $0x38] sm:$0xff] %v506
        %s515 = sand.u32 %s150, 1
        %s516 = sand.u32 %s150, 1
        %s517 = smul.addr %s516, 64
        %s518 = scalar_lea.vmem [#allocation3], %s517
        // Predicated region
        $region79: #{forward.3} parent=73 // pred_check
          %p519 = pneg %p160
        $region80: #{forward.3} parent=73 // pred_check_branch
          %521 = sbr.rel (%p519) target = $region82
        $region81: #{forward.3} parent=73 // pred_region
          %s522 = smul.addr %s20, 24
          %s523 = sadd.s32 %s21, %s522
          %s524 = smul.addr %s523, 8
          %s525 = scalar_lea.vmem %s5, %s524
          // Predicated region
          $region83: #{forward.3} parent=81 // pred_check
            _
          $region84: #{forward.3} parent=81 // pred_check_branch
            %527 = sbr.rel (0) target = $region86
          $region85: #{forward.3} parent=81 // pred_region
            // Predicated region
            $region87: #{forward.3} parent=85 // pred_check
              _
            $region88: #{forward.3} parent=85 // pred_check_branch
              %529 = sbr.rel (0) target = $region90
            $region89: #{forward.3} parent=85 // pred_region
              // Predicated region
              $region102: #{forward.3} parent=89 // pred_check
                _
              $region103: #{forward.3} parent=89 // pred_check_branch
                %558 = sbr.rel (0) target = $region105
              $region104: #{forward.3} parent=89 // pred_region
                loop: start=0, step=1, limit=1
                $region106: #{forward.3} parent=104 // loop_pre_header
                  _
                $region107: #{forward.3} parent=104 // loop_header
                  %s560 = sphi 0, %s564
                  %p561 = scmp.ge.s32.totalorder %s560, 1
                  %s565 = sphi %s518, %s518
                  %s566 = sphi %s525, %s525
                $region108: #{forward.3} parent=104 // loop_header_branch
                  %563 = sbr.rel (%p561) target = $region112
                $region109: #{forward.3} parent=104 // loop_body
                  %v567 = vld [vmem:[%s565] sm:$0xff]
                  %568 = vst [vmem:[%s566] sm:$0xff] %v567
                  %v569 = vld [vmem:[%s565 + $0x8] sm:$0xff]
                  %570 = vst [vmem:[%s566 + $0x18] sm:$0xff] %v569
                  %v571 = vld [vmem:[%s565 + $0x10] sm:$0xff]
                  %572 = vst [vmem:[%s566 + $0x30] sm:$0xff] %v571
                  %v573 = vld [vmem:[%s565 + $0x18] sm:$0xff]
                  %574 = vst [vmem:[%s566 + $0x48] sm:$0xff] %v573
                  %v575 = vld [vmem:[%s565 + $0x20] sm:$0xff]
                  %576 = vst [vmem:[%s566 + $0x60] sm:$0xff] %v575
                  %v577 = vld [vmem:[%s565 + $0x28] sm:$0xff]
                  %578 = vst [vmem:[%s566 + $0x78] sm:$0xff] %v577
                  %v579 = vld [vmem:[%s565 + $0x30] sm:$0xff]
                  %580 = vst [vmem:[%s566 + $0x90] sm:$0xff] %v579
                  %v581 = vld [vmem:[%s565 + $0x38] sm:$0xff]
                  %582 = vst [vmem:[%s566 + $0xa8] sm:$0xff] %v581
                $region110: #{forward.3} parent=104 // loop_footer
                  %s564 = sadd.s32 1, %s560
                $region111: #{forward.3} parent=104 // loop_footer_branch
                  %559 = sbr.rel target = $region107
                $region112: #{forward.3} parent=104 // loop_exit
                  _
              $region105: #{forward.3} parent=89 // pred_fallthru
                _
              // Predicated region
              $region113: #{forward.3} parent=89 // pred_check
                _
              $region114: #{forward.3} parent=89 // pred_check_branch
                %584 = sbr.rel target = $region116
              $region115: #{forward.3} parent=89 // pred_region
                _
              $region116: #{forward.3} parent=89 // pred_fallthru
                _
            $region90: #{forward.3} parent=85 // pred_fallthru
              _
            // Predicated region
            $region91: #{forward.3} parent=85 // pred_check
              _
            $region92: #{forward.3} parent=85 // pred_check_branch
              %531 = sbr.rel target = $region94
            $region93: #{forward.3} parent=85 // pred_region
              loop: start=0, step=1, limit=1
              $region95: #{forward.3} parent=93 // loop_pre_header
                _
              $region96: #{forward.3} parent=93 // loop_header
                %s534 = sphi 0, %s538
                %p535 = scmp.ge.s32.totalorder %s534, 1
                %s539 = sphi %s518, %s518
                %s540 = sphi %s525, %s525
              $region97: #{forward.3} parent=93 // loop_header_branch
                %537 = sbr.rel (%p535) target = $region101
              $region98: #{forward.3} parent=93 // loop_body
                %v541 = vld [vmem:[%s539] sm:$0xff]
                %542 = vst [vmem:[%s540] sm:$0xff] %v541
                %v543 = vld [vmem:[%s539 + $0x8] sm:$0xff]
                %544 = vst [vmem:[%s540 + $0x18] sm:$0xff] %v543
                %v545 = vld [vmem:[%s539 + $0x10] sm:$0xff]
                %546 = vst [vmem:[%s540 + $0x30] sm:$0xff] %v545
                %v547 = vld [vmem:[%s539 + $0x18] sm:$0xff]
                %548 = vst [vmem:[%s540 + $0x48] sm:$0xff] %v547
                %v549 = vld [vmem:[%s539 + $0x20] sm:$0xff]
                %550 = vst [vmem:[%s540 + $0x60] sm:$0xff] %v549
                %v551 = vld [vmem:[%s539 + $0x28] sm:$0xff]
                %552 = vst [vmem:[%s540 + $0x78] sm:$0xff] %v551
                %v553 = vld [vmem:[%s539 + $0x30] sm:$0xff]
                %554 = vst [vmem:[%s540 + $0x90] sm:$0xff] %v553
                %v555 = vld [vmem:[%s539 + $0x38] sm:$0xff]
                %556 = vst [vmem:[%s540 + $0xa8] sm:$0xff] %v555
              $region99: #{forward.3} parent=93 // loop_footer
                %s538 = sadd.s32 1, %s534
              $region100: #{forward.3} parent=93 // loop_footer_branch
                %533 = sbr.rel target = $region96
              $region101: #{forward.3} parent=93 // loop_exit
                _
            $region94: #{forward.3} parent=85 // pred_fallthru
              _
          $region86: #{forward.3} parent=81 // pred_fallthru
            _
          %585 = vnop
        $region82: #{forward.3} parent=73 // pred_fallthru
          _
      $region74: #{forward.3} parent=5 // pred_fallthru
        _
      %p586 = scmp.le.s32.totalorder 2, %s11
      // Predicated region
      $region117: #{forward.3} parent=5 // pred_check
        %p587 = pneg %p586
      $region118: #{forward.3} parent=5 // pred_check_branch
        %589 = sbr.rel (%p587) target = $region120
      $region119: #{forward.3} parent=5 // pred_region
        %s590 = ssub.s32 %s11, 2
        // Predicated region
        $region121: #{forward.3} parent=119 // pred_check
          %p591 = pneg %p166
        $region122: #{forward.3} parent=119 // pred_check_branch
          %593 = sbr.rel (%p591) target = $region124
        $region123: #{forward.3} parent=119 // pred_region
          %s594 = sand.u32 %s151, 1
          %s595 = sand.u32 %s151, 1
          %s596 = smul.addr %s595, 64
          %s597 = scalar_lea.vmem [#allocation3], %s596
        $region124: #{forward.3} parent=119 // pred_fallthru
          _
      $region120: #{forward.3} parent=5 // pred_fallthru
        _
    $region6: #{forward.3} parent=1 // loop_footer
      %s15 = sadd.s32 1, %s11
    $region7: #{forward.3} parent=1 // loop_footer_branch
      %10 = sbr.rel target = $region3
    $region8: #{forward.3} parent=1 // loop_exit
      _

// kernel: forward.2
$region0: #{forward.2}
  #allocation0 [shape = 'u32[]', space=smem, size = 0x4, offset = 0x4, fixed_abs, tag = 'smem constant byte address 0x4 - core index']
  #allocation1 [shape = 'u32[144,128]{1,0:T(1,128)}', space=vmem, size = 0x12000, scoped, tag = 'internal scratch']
  %s0 = inlined_call_operand.vmem [shape: f32[2,147,384], index: 0, kind: input, shape index: {}]
  %s1 = inlined_call_operand.vmem [shape: f32[64,147], index: 1, kind: input, shape index: {}]
  %s2 = inlined_call_operand.vmem [shape: f32[2,64,384], index: 2, kind: output, shape index: {0}]
  %s3 = inlined_call_operand.vmem [shape: f32[64,1], index: 3, kind: output, shape index: {1}]
  %s4 = inlined_call_operand.vmem [shape: f32[64,1], index: 4, kind: output, shape index: {2}]
  %5 = xla_tuple %s2, %s3, %s4
  %s6 = sld [smem:[#allocation0]]
  $region133: #{forward.2} parent=0
    _
  %s8 = ssub.s32 1, %s6
  %s9 = scalar_select 0, %s8, %s6
  $region1: #{forward.2} parent=0
    #allocation2 [shape = 'u8[155648]{0}', space=vmem, size = 0x26000, scoped, tag = 'input window, operand 0']
    #allocation3 [shape = 'u8[65536]{0}', space=vmem, size = 0x10000, scoped, tag = 'output window, operand 0']
    loop: start=0, step=1, limit=8
    $region2: #{forward.2} parent=1 // loop_pre_header
      _
    $region3: #{forward.2} parent=1 // loop_header
      %s11 = sphi 0, %s15
      %p12 = scmp.ge.s32.totalorder %s11, 8
      %s18 = sphi 0, %s30
      %s19 = sphi 0, %s26
      %s20 = sphi 0, %s18
      %s21 = sphi 0, %s19
      %s22 = sphi 0, %s20
      %s23 = sphi 0, %s21
      %s35 = sphi 0, %s37
      %s38 = sphi 0, %s35
      %s39 = sphi 0, %s38
      %s55 = sphi 0, %s39
      %s59 = sphi 0, %s59
      %s61 = sphi 0, %s59
      %s62 = sphi 0, %s61
      %s76 = sphi 0, %s62
      %s84 = sphi 0, %s86
      %s87 = sphi 0, %s84
      %s88 = sphi 0, %s87
      %s104 = sphi 0, %s88
      %s108 = sphi 0, %s108
      %s110 = sphi 0, %s108
      %s111 = sphi 0, %s110
      %s125 = sphi 0, %s111
      %s129 = sphi 0, %s129
      %s131 = sphi 0, %s129
      %s132 = sphi 0, %s131
      %s146 = sphi 0, %s132
    $region4: #{forward.2} parent=1 // loop_header_branch
      %14 = sbr.rel (%p12) target = $region8
    $region5: #{forward.2} parent=1 // loop_body
      %s16 = ssub.s32 %s11, 1
      %s17 = ssub.s32 %s11, 2
      %s24 = sadd.s32 1, %s19
      %p25 = scmp.ge.s32.totalorder %s24, 3
      %s26 = scalar_select %p25, 0, %s24
      %s27 = sadd.s32 1, %s18
      %s28 = scalar_select %p25, %s27, %s18
      %p29 = scmp.ge.s32.totalorder %s28, 2
      %s30 = scalar_select %p29, 0, %s28
      %s31 = ssub.s32 %s18, %s30
      %s32 = ssub.s32 %s19, %s26
      %s33 = sor.u32 %s31, %s32
      %p34 = scmp.eq.s32.totalorder %s33, 0
      %s36 = sadd.s32 %s35, 1
      %s37 = scalar_select %p34, %s35, %s36
      %p40 = pneg %p34
      %p41 = scmp.eq.s32.totalorder %s11, 5
      %p42 = por %p40, %p41
      %p43 = scmp.ne.s32.totalorder %s35, %s38
      %p44 = scmp.eq.s32.totalorder %s11, 0
      %p45 = por %p43, %p44
      %p46 = scmp.ne.s32.totalorder %s35, %s38
      %p47 = scmp.eq.s32.totalorder %s16, 5
      %p48 = por %p46, %p47
      %p49 = scmp.ne.s32.totalorder %s38, %s39
      %p50 = scmp.eq.s32.totalorder %s16, 0
      %p51 = por %p49, %p50
      %p52 = scmp.ne.s32.totalorder %s38, %s39
      %p53 = scmp.eq.s32.totalorder %s17, 5
      %p54 = por %p52, %p53
      %p56 = scmp.ne.s32.totalorder %s39, %s55
      %p57 = scmp.eq.s32.totalorder %s17, 0
      %p58 = por %p56, %p57
      %s60 = sadd.s32 %s59, 1
      %p63 = scmp.eq.s32.totalorder %s11, 5
      %p64 = scmp.ne.s32.totalorder %s59, %s61
      %p65 = scmp.eq.s32.totalorder %s11, 0
      %p66 = por %p64, %p65
      %p67 = scmp.ne.s32.totalorder %s59, %s61
      %p68 = scmp.eq.s32.totalorder %s16, 5
      %p69 = por %p67, %p68
      %p70 = scmp.ne.s32.totalorder %s61, %s62
      %p71 = scmp.eq.s32.totalorder %s16, 0
      %p72 = por %p70, %p71
      %p73 = scmp.ne.s32.totalorder %s61, %s62
      %p74 = scmp.eq.s32.totalorder %s17, 5
      %p75 = por %p73, %p74
      %p77 = scmp.ne.s32.totalorder %s62, %s76
      %p78 = scmp.eq.s32.totalorder %s17, 0
      %p79 = por %p77, %p78
      %s80 = ssub.s32 %s18, %s30
      %s81 = ssub.s32 %s19, %s26
      %s82 = sor.u32 %s80, %s81
      %p83 = scmp.eq.s32.totalorder %s82, 0
      %s85 = sadd.s32 %s84, 1
      %s86 = scalar_select %p83, %s84, %s85
      %p89 = pneg %p83
      %p90 = scmp.eq.s32.totalorder %s11, 5
      %p91 = por %p89, %p90
      %p92 = scmp.ne.s32.totalorder %s84, %s87
      %p93 = scmp.eq.s32.totalorder %s11, 0
      %p94 = por %p92, %p93
      %p95 = scmp.ne.s32.totalorder %s84, %s87
      %p96 = scmp.eq.s32.totalorder %s16, 5
      %p97 = por %p95, %p96
      %p98 = scmp.ne.s32.totalorder %s87, %s88
      %p99 = scmp.eq.s32.totalorder %s16, 0
      %p100 = por %p98, %p99
      %p101 = scmp.ne.s32.totalorder %s87, %s88
      %p102 = scmp.eq.s32.totalorder %s17, 5
      %p103 = por %p101, %p102
      %p105 = scmp.ne.s32.totalorder %s88, %s104
      %p106 = scmp.eq.s32.totalorder %s17, 0
      %p107 = por %p105, %p106
      %s109 = sadd.s32 %s108, 1
      %p112 = scmp.eq.s32.totalorder %s11, 5
      %p113 = scmp.ne.s32.totalorder %s108, %s110
      %p114 = scmp.eq.s32.totalorder %s11, 0
      %p115 = por %p113, %p114
      %p116 = scmp.ne.s32.totalorder %s108, %s110
      %p117 = scmp.eq.s32.totalorder %s16, 5
      %p118 = por %p116, %p117
      %p119 = scmp.ne.s32.totalorder %s110, %s111
      %p120 = scmp.eq.s32.totalorder %s16, 0
      %p121 = por %p119, %p120
      %p122 = scmp.ne.s32.totalorder %s110, %s111
      %p123 = scmp.eq.s32.totalorder %s17, 5
      %p124 = por %p122, %p123
      %p126 = scmp.ne.s32.totalorder %s111, %s125
      %p127 = scmp.eq.s32.totalorder %s17, 0
      %p128 = por %p126, %p127
      %s130 = sadd.s32 %s129, 1
      %p133 = scmp.eq.s32.totalorder %s11, 5
      %p134 = scmp.ne.s32.totalorder %s129, %s131
      %p135 = scmp.eq.s32.totalorder %s11, 0
      %p136 = por %p134, %p135
      %p137 = scmp.ne.s32.totalorder %s129, %s131
      %p138 = scmp.eq.s32.totalorder %s16, 5
      %p139 = por %p137, %p138
      %p140 = scmp.ne.s32.totalorder %s131, %s132
      %p141 = scmp.eq.s32.totalorder %s16, 0
      %p142 = por %p140, %p141
      %p143 = scmp.ne.s32.totalorder %s131, %s132
      %p144 = scmp.eq.s32.totalorder %s17, 5
      %p145 = por %p143, %p144
      %p147 = scmp.ne.s32.totalorder %s132, %s146
      %p148 = scmp.eq.s32.totalorder %s17, 0
      %p149 = por %p147, %p148
      %p150 = scmp.le.s32.totalorder 1, %s11
      %p151 = scmp.lt.s32.totalorder %s11, 7
      %p152 = pnand %p150, %p151
      %p153 = pneg %p152
      // Predicated region
      $region9: #{forward.2} parent=5 // pred_check
        _
      $region10: #{forward.2} parent=5 // pred_check_branch
        %155 = sbr.rel (%p152) target = $region12
      $region11: #{forward.2} parent=5 // pred_region
        %s156 = ssub.s32 %s11, 1
        // Predicated region
        $region13: #{forward.2} parent=11 // pred_check
          %p157 = pneg %p72
        $region14: #{forward.2} parent=11 // pred_check_branch
          %159 = sbr.rel (%p157) target = $region16
        $region15: #{forward.2} parent=11 // pred_region
          _
        $region16: #{forward.2} parent=11 // pred_fallthru
          _
      $region12: #{forward.2} parent=5 // pred_fallthru
        _
      %p160 = scmp.lt.s32.totalorder %s11, 6
      // Predicated region
      $region17: #{forward.2} parent=5 // pred_check
        %p161 = pneg %p160
      $region18: #{forward.2} parent=5 // pred_check_branch
        %163 = sbr.rel (%p161) target = $region20
      $region19: #{forward.2} parent=5 // pred_region
        // Predicated region
        $region21: #{forward.2} parent=19 // pred_check
          %p164 = pneg %p45
        $region22: #{forward.2} parent=19 // pred_check_branch
          %166 = sbr.rel (%p164) target = $region24
        $region23: #{forward.2} parent=19 // pred_region
          %s167 = sand.u32 %s35, 1
          %s168 = sand.u32 %s35, 1
          %s169 = smul.addr %s168, 152
          %s170 = scalar_lea.vmem [#allocation2], %s169
          %s171 = smul.addr %s18, 57
          %s172 = sadd.s32 %s19, %s171
          %s173 = smul.addr %s172, 8
          %s174 = scalar_lea.vmem %s0, %s173
          // Predicated region
          $region25: #{forward.2} parent=23 // pred_check
            _
          $region26: #{forward.2} parent=23 // pred_check_branch
            %176 = sbr.rel (0) target = $region28
          $region27: #{forward.2} parent=23 // pred_region
            // Predicated region
            $region29: #{forward.2} parent=27 // pred_check
              _
            $region30: #{forward.2} parent=27 // pred_check_branch
              %178 = sbr.rel (0) target = $region32
            $region31: #{forward.2} parent=27 // pred_region
              // Predicated region
              $region44: #{forward.2} parent=31 // pred_check
                _
              $region45: #{forward.2} parent=31 // pred_check_branch
                %229 = sbr.rel (0) target = $region47
              $region46: #{forward.2} parent=31 // pred_region
                loop: start=0, step=1, limit=1
                $region48: #{forward.2} parent=46 // loop_pre_header
                  _
                $region49: #{forward.2} parent=46 // loop_header
                  %s231 = sphi 0, %s235
                  %p232 = scmp.ge.s32.totalorder %s231, 1
                  %s236 = sphi %s174, %s174
                  %s237 = sphi %s170, %s170
                $region50: #{forward.2} parent=46 // loop_header_branch
                  %234 = sbr.rel (%p232) target = $region54
                $region51: #{forward.2} parent=46 // loop_body
                  %v238 = vld [vmem:[%s236] sm:$0xff]
                  %239 = vst [vmem:[%s237] sm:$0xff] %v238
                  %v240 = vld [vmem:[%s236 + $0x18] sm:$0xff]
                  %241 = vst [vmem:[%s237 + $0x8] sm:$0xff] %v240
                  %v242 = vld [vmem:[%s236 + $0x30] sm:$0xff]
                  %243 = vst [vmem:[%s237 + $0x10] sm:$0xff] %v242
                  %v244 = vld [vmem:[%s236 + $0x48] sm:$0xff]
                  %245 = vst [vmem:[%s237 + $0x18] sm:$0xff] %v244
                  %v246 = vld [vmem:[%s236 + $0x60] sm:$0xff]
                  %247 = vst [vmem:[%s237 + $0x20] sm:$0xff] %v246
                  %v248 = vld [vmem:[%s236 + $0x78] sm:$0xff]
                  %249 = vst [vmem:[%s237 + $0x28] sm:$0xff] %v248
                  %v250 = vld [vmem:[%s236 + $0x90] sm:$0xff]
                  %251 = vst [vmem:[%s237 + $0x30] sm:$0xff] %v250
                  %v252 = vld [vmem:[%s236 + $0xa8] sm:$0xff]
                  %253 = vst [vmem:[%s237 + $0x38] sm:$0xff] %v252
                  %v254 = vld [vmem:[%s236 + $0xc0] sm:$0xff]
                  %255 = vst [vmem:[%s237 + $0x40] sm:$0xff] %v254
                  %v256 = vld [vmem:[%s236 + $0xd8] sm:$0xff]
                  %257 = vst [vmem:[%s237 + $0x48] sm:$0xff] %v256
                  %v258 = vld [vmem:[%s236 + $0xf0] sm:$0xff]
                  %259 = vst [vmem:[%s237 + $0x50] sm:$0xff] %v258
                  %v260 = vld [vmem:[%s236 + $0x108] sm:$0xff]
                  %261 = vst [vmem:[%s237 + $0x58] sm:$0xff] %v260
                  %v262 = vld [vmem:[%s236 + $0x120] sm:$0xff]
                  %263 = vst [vmem:[%s237 + $0x60] sm:$0xff] %v262
                  %v264 = vld [vmem:[%s236 + $0x138] sm:$0xff]
                  %265 = vst [vmem:[%s237 + $0x68] sm:$0xff] %v264
                  %v266 = vld [vmem:[%s236 + $0x150] sm:$0xff]
                  %267 = vst [vmem:[%s237 + $0x70] sm:$0xff] %v266
                  %v268 = vld [vmem:[%s236 + $0x168] sm:$0xff]
                  %269 = vst [vmem:[%s237 + $0x78] sm:$0xff] %v268
                  %v270 = vld [vmem:[%s236 + $0x180] sm:$0xff]
                  %271 = vst [vmem:[%s237 + $0x80] sm:$0xff] %v270
                  %v272 = vld [vmem:[%s236 + $0x198] sm:$0xff]
                  %273 = vst [vmem:[%s237 + $0x88] sm:$0xff] %v272
                  %v274 = vld [vmem:[%s236 + $0x1b0] sm:$0xff]
                  %275 = vst [vmem:[%s237 + $0x90] sm:$0xff] %v274
                $region52: #{forward.2} parent=46 // loop_footer
                  %s235 = sadd.s32 1, %s231
                $region53: #{forward.2} parent=46 // loop_footer_branch
                  %230 = sbr.rel target = $region49
                $region54: #{forward.2} parent=46 // loop_exit
                  _
              $region47: #{forward.2} parent=31 // pred_fallthru
                _
              // Predicated region
              $region55: #{forward.2} parent=31 // pred_check
                _
              $region56: #{forward.2} parent=31 // pred_check_branch
                %277 = sbr.rel target = $region58
              $region57: #{forward.2} parent=31 // pred_region
                _
              $region58: #{forward.2} parent=31 // pred_fallthru
                _
            $region32: #{forward.2} parent=27 // pred_fallthru
              _
            // Predicated region
            $region33: #{forward.2} parent=27 // pred_check
              _
            $region34: #{forward.2} parent=27 // pred_check_branch
              %180 = sbr.rel target = $region36
            $region35: #{forward.2} parent=27 // pred_region
              loop: start=0, step=1, limit=1
              $region37: #{forward.2} parent=35 // loop_pre_header
                _
              $region38: #{forward.2} parent=35 // loop_header
                %s183 = sphi 0, %s187
                %p184 = scmp.ge.s32.totalorder %s183, 1
                %s188 = sphi %s174, %s174
                %s189 = sphi %s170, %s170
              $region39: #{forward.2} parent=35 // loop_header_branch
                %186 = sbr.rel (%p184) target = $region43
              $region40: #{forward.2} parent=35 // loop_body
                %v190 = vld [vmem:[%s188] sm:$0xff]
                %191 = vst [vmem:[%s189] sm:$0xff] %v190
                %v192 = vld [vmem:[%s188 + $0x18] sm:$0xff]
                %193 = vst [vmem:[%s189 + $0x8] sm:$0xff] %v192
                %v194 = vld [vmem:[%s188 + $0x30] sm:$0xff]
                %195 = vst [vmem:[%s189 + $0x10] sm:$0xff] %v194
                %v196 = vld [vmem:[%s188 + $0x48] sm:$0xff]
                %197 = vst [vmem:[%s189 + $0x18] sm:$0xff] %v196
                %v198 = vld [vmem:[%s188 + $0x60] sm:$0xff]
                %199 = vst [vmem:[%s189 + $0x20] sm:$0xff] %v198
                %v200 = vld [vmem:[%s188 + $0x78] sm:$0xff]
                %201 = vst [vmem:[%s189 + $0x28] sm:$0xff] %v200
                %v202 = vld [vmem:[%s188 + $0x90] sm:$0xff]
                %203 = vst [vmem:[%s189 + $0x30] sm:$0xff] %v202
                %v204 = vld [vmem:[%s188 + $0xa8] sm:$0xff]
                %205 = vst [vmem:[%s189 + $0x38] sm:$0xff] %v204
                %v206 = vld [vmem:[%s188 + $0xc0] sm:$0xff]
                %207 = vst [vmem:[%s189 + $0x40] sm:$0xff] %v206
                %v208 = vld [vmem:[%s188 + $0xd8] sm:$0xff]
                %209 = vst [vmem:[%s189 + $0x48] sm:$0xff] %v208
                %v210 = vld [vmem:[%s188 + $0xf0] sm:$0xff]
                %211 = vst [vmem:[%s189 + $0x50] sm:$0xff] %v210
                %v212 = vld [vmem:[%s188 + $0x108] sm:$0xff]
                %213 = vst [vmem:[%s189 + $0x58] sm:$0xff] %v212
                %v214 = vld [vmem:[%s188 + $0x120] sm:$0xff]
                %215 = vst [vmem:[%s189 + $0x60] sm:$0xff] %v214
                %v216 = vld [vmem:[%s188 + $0x138] sm:$0xff]
                %217 = vst [vmem:[%s189 + $0x68] sm:$0xff] %v216
                %v218 = vld [vmem:[%s188 + $0x150] sm:$0xff]
                %219 = vst [vmem:[%s189 + $0x70] sm:$0xff] %v218
                %v220 = vld [vmem:[%s188 + $0x168] sm:$0xff]
                %221 = vst [vmem:[%s189 + $0x78] sm:$0xff] %v220
                %v222 = vld [vmem:[%s188 + $0x180] sm:$0xff]
                %223 = vst [vmem:[%s189 + $0x80] sm:$0xff] %v222
                %v224 = vld [vmem:[%s188 + $0x198] sm:$0xff]
                %225 = vst [vmem:[%s189 + $0x88] sm:$0xff] %v224
                %v226 = vld [vmem:[%s188 + $0x1b0] sm:$0xff]
                %227 = vst [vmem:[%s189 + $0x90] sm:$0xff] %v226
              $region41: #{forward.2} parent=35 // loop_footer
                %s187 = sadd.s32 1, %s183
              $region42: #{forward.2} parent=35 // loop_footer_branch
                %182 = sbr.rel target = $region38
              $region43: #{forward.2} parent=35 // loop_exit
                _
            $region36: #{forward.2} parent=27 // pred_fallthru
              _
          $region28: #{forward.2} parent=23 // pred_fallthru
            _
          %278 = vnop
        $region24: #{forward.2} parent=19 // pred_fallthru
          _
      $region20: #{forward.2} parent=5 // pred_fallthru
        _
      %p279 = scmp.le.s32.totalorder 1, %s11
      %p280 = scmp.lt.s32.totalorder %s11, 7
      %p281 = pnand %p279, %p280
      %p282 = pneg %p281
      // Predicated region
      $region59: #{forward.2} parent=5 // pred_check
        _
      $region60: #{forward.2} parent=5 // pred_check_branch
        %284 = sbr.rel (%p281) target = $region62
      $region61: #{forward.2} parent=5 // pred_region
        %s285 = ssub.s32 %s11, 1
        %s286 = sand.u32 %s38, 1
        %s287 = sand.u32 %s38, 1
        %s288 = smul.addr %s287, 152
        %s289 = scalar_lea.vmem [#allocation2], %s288
        // Predicated region
        $region63: #{forward.2} parent=61 // pred_check
          %p290 = pneg %p51
        $region64: #{forward.2} parent=61 // pred_check_branch
          %292 = sbr.rel (%p290) target = $region66
        $region65: #{forward.2} parent=61 // pred_region
          _
        $region66: #{forward.2} parent=61 // pred_fallthru
          _
        %s293 = sand.u32 %s38, 1
        %s294 = sand.u32 %s38, 1
        %s295 = smul.addr %s294, 152
        %s296 = scalar_lea.vmem [#allocation2], %s295
        %p297 = pneg %p51
        %p298 = pneg %p48
        %p299 = pneg %p72
        %p300 = pneg %p69
        %p301 = pneg %p100
        %p302 = pneg %p97
        %s303 = sand.u32 %s87, 1
        %s304 = sand.u32 %s87, 1
        %s305 = smul.addr %s304, 64
        %s306 = scalar_lea.vmem [#allocation3], %s305
        %p307 = pneg %p121
        %p308 = pneg %p118
        %p309 = pneg %p142
        %p310 = pneg %p139
        %v311 = vld [vmem:[%s1] sm:$0xff]
        %v312 = vld [vmem:[%s1 + $0x8] sm:$0xff]
        %v313 = vld [vmem:[%s1 + $0x10] sm:$0xff]
        %v314 = vld [vmem:[%s1 + $0x18] sm:$0xff]
        %v315 = vld [vmem:[%s1 + $0x20] sm:$0xff]
        %v316 = vld [vmem:[%s1 + $0x28] sm:$0xff]
        %v317 = vld [vmem:[%s1 + $0x30] sm:$0xff]
        %v318 = vld [vmem:[%s1 + $0x38] sm:$0xff]
        %v319 = vld [vmem:[%s1 + $0x40] sm:$0xff]
        %v320 = vld [vmem:[%s1 + $0x48] sm:$0xff]
        %v321 = vld [vmem:[%s1 + $0x50] sm:$0xff]
        %v322 = vld [vmem:[%s1 + $0x58] sm:$0xff]
        %v323 = vld [vmem:[%s1 + $0x60] sm:$0xff]
        %v324 = vld [vmem:[%s1 + $0x68] sm:$0xff]
        %v325 = vld [vmem:[%s1 + $0x70] sm:$0xff]
        %v326 = vld [vmem:[%s1 + $0x78] sm:$0xff]
        %v327 = vld [vmem:[%s289] sm:$0xff]
        %v328 = vld [vmem:[%s289 + $0x8] sm:$0xff]
        %v329 = vld [vmem:[%s289 + $0x10] sm:$0xff]
        %v330 = vld [vmem:[%s289 + $0x18] sm:$0xff]
        %v331 = vld [vmem:[%s289 + $0x20] sm:$0xff]
        %v332 = vld [vmem:[%s289 + $0x28] sm:$0xff]
        %v333 = vld [vmem:[%s289 + $0x30] sm:$0xff]
        %v334 = vld [vmem:[%s289 + $0x38] sm:$0xff]
        %v335 = vld [vmem:[%s289 + $0x40] sm:$0xff]
        %v336 = vld [vmem:[%s289 + $0x48] sm:$0xff]
        %v337 = vld [vmem:[%s289 + $0x50] sm:$0xff]
        %v338 = vld [vmem:[%s289 + $0x58] sm:$0xff]
        %v339 = vld [vmem:[%s289 + $0x60] sm:$0xff]
        %v340 = vld [vmem:[%s289 + $0x68] sm:$0xff]
        %v341 = vld [vmem:[%s289 + $0x70] sm:$0xff]
        %v342 = vld [vmem:[%s289 + $0x78] sm:$0xff]
        %v343 = vld [vmem:[%s289 + $0x80] sm:$0xff]
        %v344 = vld [vmem:[%s289 + $0x88] sm:$0xff]
        %v345 = vld [vmem:[%s289 + $0x90] sm:$0x7]
        %vm346 = vcmask 154624
        %v348 = vsel %vm346, %v312, 0
        %v351 = vsel %vm346, %v314, 0
        %v354 = vsel %vm346, %v316, 0
        %v357 = vsel %vm346, %v318, 0
        %v360 = vsel %vm346, %v320, 0
        %v363 = vsel %vm346, %v322, 0
        %v366 = vsel %vm346, %v324, 0
        %v369 = vsel %vm346, %v326, 0
        %vm371 = vcmask 1042432
        %v373 = vsel %vm371, %v345, 0
        %375 = vmatprep.subr.mxu0 0.0
        %376 = vmatpush1.msra.mxu0 %v327
        %377 = vmatprep.subr.mxu0 0.0
        %378 = vmatpush1.msra.mxu0 %v328
        %379 = vmatprep.subr.mxu0 0.0
        %380 = vmatpush1.msra.mxu0 %v329
        %381 = vmatprep.subr.mxu0 0.0
        %382 = vmatpush1.msra.mxu0 %v330
        %383 = vmatprep.subr.mxu0 0.0
        %384 = vmatpush1.msra.mxu0 %v331
        %385 = vmatprep.subr.mxu0 0.0
        %386 = vmatpush1.msra.mxu0 %v332
        %387 = vmatprep.subr.mxu0 0.0
        %388 = vmatpush1.msra.mxu0 %v333
        %389 = vmatprep.subr.mxu0 0.0
        %390 = vmatpush1.msra.mxu0 %v334
        %391 = vmatprep.subr.mxu0 0.0
        %392 = vmatpush1.msra.mxu0 %v335
        %393 = vmatprep.subr.mxu0 0.0
        %394 = vmatpush1.msra.mxu0 %v336
        %395 = vmatprep.subr.mxu0 0.0
        %396 = vmatpush1.msra.mxu0 %v337
        %397 = vmatprep.subr.mxu0 0.0
        %398 = vmatpush1.msra.mxu0 %v338
        %399 = vmatprep.subr.mxu0 0.0
        %400 = vmatpush1.msra.mxu0 %v339
        %401 = vmatprep.subr.mxu0 0.0
        %402 = vmatpush1.msra.mxu0 %v340
        %403 = vmatprep.subr.mxu0 0.0
        %404 = vmatpush1.msra.mxu0 %v341
        %405 = vmatprep.subr.mxu0 0.0
        %406 = vmatpush1.msra.mxu0 %v342
        %407 = vmatprep.subr.mxu0 0.0
        %408 = vmatpush1.msra.mxu0 %v343
        %409 = vmatprep.subr.mxu0 0.0
        %410 = vmatpush1.msra.mxu0 %v344
        %411 = vmatprep.subr.mxu0 0.0
        %412 = vmatpush1.msra.mxu0 %v373
        %413 = vmatprep.subr.mxu0 0.0
        %414 = vmatpush1.msra.mxu0 0.0
        %415 = vmatprep.subr.mxu0 0.0
        %416 = vmatpush1.msra.mxu0 0.0
        %417 = vmatprep.subr.mxu0 0.0
        %418 = vmatpush1.msra.mxu0 0.0
        %419 = vmatprep.subr.mxu0 0.0
        %420 = vmatpush1.msra.mxu0 0.0
        %421 = vmatprep.subr.mxu0 0.0
        %422 = vmatpush1.msra.mxu0 0.0
        %423 = vmatprep.subr.mxu0 0.0
        %424 = vmatpush1.msra.mxu0 0.0
        %425 = vmatprep.subr.mxu0 0.0
        %426 = vmatpush1.msra.mxu0 0.0
        %427 = vmatprep.subr.mxu0 0.0
        %428 = vmatpush1.msra.mxu0 0.0
        %429 = vmatprep.subr.mxu0 0.0
        %430 = vmatpush1.msra.mxu0 0.0
        %431 = vmatprep.subr.mxu0 0.0
        %432 = vmatpush1.msra.mxu0 0.0
        %433 = vmatprep.subr.mxu0 0.0
        %434 = vmatpush1.msra.mxu0 0.0
        %435 = vmatprep.subr.mxu0 0.0
        %436 = vmatpush1.msra.mxu0 0.0
        %437 = vmatprep.subr.mxu0 0.0
        %438 = vmatpush1.msra.mxu0 0.0
        %439 = vmatprep.mubr.f32.mxu0 %v348
        %440 = vmatmul.mubr.f32.gmra.mrb[0].mxu0 %v311
        %v441 = vpop.f32.mrb[0].mxu0
        %v442 = vadd.f32 0.0, %v441
        %v443 = vpop.f32.mrb[0].mxu0
        %444 = vmatprep.mubr.f32.mxu0 %v351
        %445 = vmatmul.mubr.f32.gmra.mrb[0].mxu0 %v313
        %v446 = vpop.f32.mrb[0].mxu0
        %v447 = vadd.f32 0.0, %v446
        %v448 = vpop.f32.mrb[0].mxu0
        %449 = vmatprep.mubr.f32.mxu0 %v354
        %450 = vmatmul.mubr.f32.gmra.mrb[0].mxu0 %v315
        %v451 = vpop.f32.mrb[0].mxu0
        %v452 = vadd.f32 0.0, %v451
        %v453 = vpop.f32.mrb[0].mxu0
        %454 = vmatprep.mubr.f32.mxu0 %v357
        %455 = vmatmul.mubr.f32.gmra.mrb[0].mxu0 %v317
        %v456 = vpop.f32.mrb[0].mxu0
        %v457 = vadd.f32 0.0, %v456
        %v458 = vpop.f32.mrb[0].mxu0
        %459 = vmatprep.mubr.f32.mxu0 %v360
        %460 = vmatmul.mubr.f32.gmra.mrb[0].mxu0 %v319
        %v461 = vpop.f32.mrb[0].mxu0
        %v462 = vadd.f32 0.0, %v461
        %v463 = vpop.f32.mrb[0].mxu0
        %464 = vmatprep.mubr.f32.mxu0 %v363
        %465 = vmatmul.mubr.f32.gmra.mrb[0].mxu0 %v321
        %v466 = vpop.f32.mrb[0].mxu0
        %v467 = vadd.f32 0.0, %v466
        %v468 = vpop.f32.mrb[0].mxu0
        %469 = vmatprep.mubr.f32.mxu0 %v366
        %470 = vmatmul.mubr.f32.gmra.mrb[0].mxu0 %v323
        %v471 = vpop.f32.mrb[0].mxu0
        %v472 = vadd.f32 0.0, %v471
        %v473 = vpop.f32.mrb[0].mxu0
        %474 = vmatprep.mubr.f32.mxu0 %v369
        %475 = vmatmul.mubr.f32.gmra.mrb[0].mxu0 %v325
        %v476 = vpop.f32.mrb[0].mxu0
        %v477 = vadd.f32 0.0, %v476
        %v478 = vpop.f32.mrb[0].mxu0
        %479 = vdwg.mxu0
        %480 = vst [vmem:[%s306] sm:$0xff] %v442
        %481 = vst [vmem:[%s306 + $0x8] sm:$0xff] %v447
        %482 = vst [vmem:[%s306 + $0x10] sm:$0xff] %v452
        %483 = vst [vmem:[%s306 + $0x18] sm:$0xff] %v457
        %484 = vst [vmem:[%s306 + $0x20] sm:$0xff] %v462
        %485 = vst [vmem:[%s306 + $0x28] sm:$0xff] %v467
        %486 = vst [vmem:[%s306 + $0x30] sm:$0xff] %v472
        %487 = vst [vmem:[%s306 + $0x38] sm:$0xff] %v477
        %p488 = scmp.eq.s32.totalorder %s20, 0
        %p489 = scmp.eq.s32.totalorder %s21, 0
        %p490 = pnand %p488, %p489
        %p491 = pneg %p490
        // Predicated region
        $region67: #{forward.2} parent=61 // pred_check
          _
        $region68: #{forward.2} parent=61 // pred_check_branch
          %493 = sbr.rel (%p490) target = $region70
        $region69: #{forward.2} parent=61 // pred_region
          %vm494 = vcmask 7168
          %495 = vst.msk [vmem:[%s3] sm:$0xff] %vm494, 0.0
          %496 = vst.msk [vmem:[%s3 + $0x8] sm:$0xff] %vm494, 0.0
          %497 = vst.msk [vmem:[%s3 + $0x10] sm:$0xff] %vm494, 0.0
          %498 = vst.msk [vmem:[%s3 + $0x18] sm:$0xff] %vm494, 0.0
          %499 = vst.msk [vmem:[%s3 + $0x20] sm:$0xff] %vm494, 0.0
          %500 = vst.msk [vmem:[%s3 + $0x28] sm:$0xff] %vm494, 0.0
          %501 = vst.msk [vmem:[%s3 + $0x30] sm:$0xff] %vm494, 0.0
          %502 = vst.msk [vmem:[%s3 + $0x38] sm:$0xff] %vm494, 0.0
          %503 = vst.msk [vmem:[%s4] sm:$0xff] %vm494, 0.0
          %504 = vst.msk [vmem:[%s4 + $0x8] sm:$0xff] %vm494, 0.0
          %505 = vst.msk [vmem:[%s4 + $0x10] sm:$0xff] %vm494, 0.0
          %506 = vst.msk [vmem:[%s4 + $0x18] sm:$0xff] %vm494, 0.0
          %507 = vst.msk [vmem:[%s4 + $0x20] sm:$0xff] %vm494, 0.0
          %508 = vst.msk [vmem:[%s4 + $0x28] sm:$0xff] %vm494, 0.0
          %509 = vst.msk [vmem:[%s4 + $0x30] sm:$0xff] %vm494, 0.0
          %510 = vst.msk [vmem:[%s4 + $0x38] sm:$0xff] %vm494, 0.0
        $region70: #{forward.2} parent=61 // pred_fallthru
          _
        %v511 = vld [vmem:[%s3] sm:$0xff]
        %v512 = vld [vmem:[%s3 + $0x8] sm:$0xff]
        %v513 = vld [vmem:[%s3 + $0x10] sm:$0xff]
        %v514 = vld [vmem:[%s3 + $0x18] sm:$0xff]
        %v515 = vld [vmem:[%s3 + $0x20] sm:$0xff]
        %v516 = vld [vmem:[%s3 + $0x28] sm:$0xff]
        %v517 = vld [vmem:[%s3 + $0x30] sm:$0xff]
        %v518 = vld [vmem:[%s3 + $0x38] sm:$0xff]
        %519 = vadd.xlane.f32.xlu0 %v442
        %v520 = vpop.xlane.xlu0 %519
        %521 = vadd.xlane.f32.xlu0 %v447
        %v522 = vpop.xlane.xlu0 %521
        %523 = vadd.xlane.f32.xlu0 %v452
        %v524 = vpop.xlane.xlu0 %523
        %525 = vadd.xlane.f32.xlu0 %v457
        %v526 = vpop.xlane.xlu0 %525
        %527 = vadd.xlane.f32.xlu0 %v462
        %v528 = vpop.xlane.xlu0 %527
        %529 = vadd.xlane.f32.xlu0 %v467
        %v530 = vpop.xlane.xlu0 %529
        %531 = vadd.xlane.f32.xlu0 %v472
        %v532 = vpop.xlane.xlu0 %531
        %533 = vadd.xlane.f32.xlu0 %v477
        %v534 = vpop.xlane.xlu0 %533
        %v535 = vadd.f32 %v511, %v520
        %v536 = vadd.f32 %v512, %v522
        %v537 = vadd.f32 %v513, %v524
        %v538 = vadd.f32 %v514, %v526
        %v539 = vadd.f32 %v515, %v528
        %v540 = vadd.f32 %v516, %v530
        %v541 = vadd.f32 %v517, %v532
        %v542 = vadd.f32 %v518, %v534
        %vm543 = vcmask 7168
        %544 = vst.msk [vmem:[%s3] sm:$0xff] %vm543, %v535
        %545 = vst.msk [vmem:[%s3 + $0x8] sm:$0xff] %vm543, %v536
        %546 = vst.msk [vmem:[%s3 + $0x10] sm:$0xff] %vm543, %v537
        %547 = vst.msk [vmem:[%s3 + $0x18] sm:$0xff] %vm543, %v538
        %548 = vst.msk [vmem:[%s3 + $0x20] sm:$0xff] %vm543, %v539
        %549 = vst.msk [vmem:[%s3 + $0x28] sm:$0xff] %vm543, %v540
        %550 = vst.msk [vmem:[%s3 + $0x30] sm:$0xff] %vm543, %v541
        %551 = vst.msk [vmem:[%s3 + $0x38] sm:$0xff] %vm543, %v542
        %v552 = vld [vmem:[%s4] sm:$0xff]
        %v553 = vld [vmem:[%s4 + $0x8] sm:$0xff]
        %v554 = vld [vmem:[%s4 + $0x10] sm:$0xff]
        %v555 = vld [vmem:[%s4 + $0x18] sm:$0xff]
        %v556 = vld [vmem:[%s4 + $0x20] sm:$0xff]
        %v557 = vld [vmem:[%s4 + $0x28] sm:$0xff]
        %v558 = vld [vmem:[%s4 + $0x30] sm:$0xff]
        %v559 = vld [vmem:[%s4 + $0x38] sm:$0xff]
        %v560 = vmul.f32 %v442, %v442
        %v561 = vmul.f32 %v447, %v447
        %v562 = vmul.f32 %v452, %v452
        %v563 = vmul.f32 %v457, %v457
        %v564 = vmul.f32 %v462, %v462
        %v565 = vmul.f32 %v467, %v467
        %v566 = vmul.f32 %v472, %v472
        %v567 = vmul.f32 %v477, %v477
        %568 = vadd.xlane.f32.xlu0 %v560
        %v569 = vpop.xlane.xlu0 %568
        %570 = vadd.xlane.f32.xlu0 %v561
        %v571 = vpop.xlane.xlu0 %570
        %572 = vadd.xlane.f32.xlu0 %v562
        %v573 = vpop.xlane.xlu0 %572
        %574 = vadd.xlane.f32.xlu0 %v563
        %v575 = vpop.xlane.xlu0 %574
        %576 = vadd.xlane.f32.xlu0 %v564
        %v577 = vpop.xlane.xlu0 %576
        %578 = vadd.xlane.f32.xlu0 %v565
        %v579 = vpop.xlane.xlu0 %578
        %580 = vadd.xlane.f32.xlu0 %v566
        %v581 = vpop.xlane.xlu0 %580
        %582 = vadd.xlane.f32.xlu0 %v567
        %v583 = vpop.xlane.xlu0 %582
        %v584 = vadd.f32 %v552, %v569
        %v585 = vadd.f32 %v553, %v571
        %v586 = vadd.f32 %v554, %v573
        %v587 = vadd.f32 %v555, %v575
        %v588 = vadd.f32 %v556, %v577
        %v589 = vadd.f32 %v557, %v579
        %v590 = vadd.f32 %v558, %v581
        %v591 = vadd.f32 %v559, %v583
        %592 = vst.msk [vmem:[%s4] sm:$0xff] %vm543, %v584
        %593 = vst.msk [vmem:[%s4 + $0x8] sm:$0xff] %vm543, %v585
        %594 = vst.msk [vmem:[%s4 + $0x10] sm:$0xff] %vm543, %v586
        %595 = vst.msk [vmem:[%s4 + $0x18] sm:$0xff] %vm543, %v587
        %596 = vst.msk [vmem:[%s4 + $0x20] sm:$0xff] %vm543, %v588
        %597 = vst.msk [vmem:[%s4 + $0x28] sm:$0xff] %vm543, %v589
        %598 = vst.msk [vmem:[%s4 + $0x30] sm:$0xff] %vm543, %v590
        %599 = vst.msk [vmem:[%s4 + $0x38] sm:$0xff] %vm543, %v591
        %s600 = sand.u32 %s87, 1
        %s601 = sand.u32 %s87, 1
        %s602 = smul.addr %s601, 64
        %s603 = scalar_lea.vmem [#allocation3], %s602
        // Predicated region
        $region71: #{forward.2} parent=61 // pred_check
          %p604 = pneg %p97
        $region72: #{forward.2} parent=61 // pred_check_branch
          %606 = sbr.rel (%p604) target = $region74
        $region73: #{forward.2} parent=61 // pred_region
          %s607 = smul.addr %s20, 24
          %s608 = sadd.s32 %s21, %s607
          %s609 = smul.addr %s608, 8
          %s610 = scalar_lea.vmem %s2, %s609
          // Predicated region
          $region75: #{forward.2} parent=73 // pred_check
            _
          $region76: #{forward.2} parent=73 // pred_check_branch
            %612 = sbr.rel (0) target = $region78
          $region77: #{forward.2} parent=73 // pred_region
            // Predicated region
            $region79: #{forward.2} parent=77 // pred_check
              _
            $region80: #{forward.2} parent=77 // pred_check_branch
              %614 = sbr.rel (0) target = $region82
            $region81: #{forward.2} parent=77 // pred_region
              // Predicated region
              $region94: #{forward.2} parent=81 // pred_check
                _
              $region95: #{forward.2} parent=81 // pred_check_branch
                %643 = sbr.rel (0) target = $region97
              $region96: #{forward.2} parent=81 // pred_region
                loop: start=0, step=1, limit=1
                $region98: #{forward.2} parent=96 // loop_pre_header
                  _
                $region99: #{forward.2} parent=96 // loop_header
                  %s645 = sphi 0, %s649
                  %p646 = scmp.ge.s32.totalorder %s645, 1
                  %s650 = sphi %s603, %s603
                  %s651 = sphi %s610, %s610
                $region100: #{forward.2} parent=96 // loop_header_branch
                  %648 = sbr.rel (%p646) target = $region104
                $region101: #{forward.2} parent=96 // loop_body
                  %v652 = vld [vmem:[%s650] sm:$0xff]
                  %653 = vst [vmem:[%s651] sm:$0xff] %v652
                  %v654 = vld [vmem:[%s650 + $0x8] sm:$0xff]
                  %655 = vst [vmem:[%s651 + $0x18] sm:$0xff] %v654
                  %v656 = vld [vmem:[%s650 + $0x10] sm:$0xff]
                  %657 = vst [vmem:[%s651 + $0x30] sm:$0xff] %v656
                  %v658 = vld [vmem:[%s650 + $0x18] sm:$0xff]
                  %659 = vst [vmem:[%s651 + $0x48] sm:$0xff] %v658
                  %v660 = vld [vmem:[%s650 + $0x20] sm:$0xff]
                  %661 = vst [vmem:[%s651 + $0x60] sm:$0xff] %v660
                  %v662 = vld [vmem:[%s650 + $0x28] sm:$0xff]
                  %663 = vst [vmem:[%s651 + $0x78] sm:$0xff] %v662
                  %v664 = vld [vmem:[%s650 + $0x30] sm:$0xff]
                  %665 = vst [vmem:[%s651 + $0x90] sm:$0xff] %v664
                  %v666 = vld [vmem:[%s650 + $0x38] sm:$0xff]
                  %667 = vst [vmem:[%s651 + $0xa8] sm:$0xff] %v666
                $region102: #{forward.2} parent=96 // loop_footer
                  %s649 = sadd.s32 1, %s645
                $region103: #{forward.2} parent=96 // loop_footer_branch
                  %644 = sbr.rel target = $region99
                $region104: #{forward.2} parent=96 // loop_exit
                  _
              $region97: #{forward.2} parent=81 // pred_fallthru
                _
              // Predicated region
              $region105: #{forward.2} parent=81 // pred_check
                _
              $region106: #{forward.2} parent=81 // pred_check_branch
                %669 = sbr.rel target = $region108
              $region107: #{forward.2} parent=81 // pred_region
                _
              $region108: #{forward.2} parent=81 // pred_fallthru
                _
            $region82: #{forward.2} parent=77 // pred_fallthru
              _
            // Predicated region
            $region83: #{forward.2} parent=77 // pred_check
              _
            $region84: #{forward.2} parent=77 // pred_check_branch
              %616 = sbr.rel target = $region86
            $region85: #{forward.2} parent=77 // pred_region
              loop: start=0, step=1, limit=1
              $region87: #{forward.2} parent=85 // loop_pre_header
                _
              $region88: #{forward.2} parent=85 // loop_header
                %s619 = sphi 0, %s623
                %p620 = scmp.ge.s32.totalorder %s619, 1
                %s624 = sphi %s603, %s603
                %s625 = sphi %s610, %s610
              $region89: #{forward.2} parent=85 // loop_header_branch
                %622 = sbr.rel (%p620) target = $region93
              $region90: #{forward.2} parent=85 // loop_body
                %v626 = vld [vmem:[%s624] sm:$0xff]
                %627 = vst [vmem:[%s625] sm:$0xff] %v626
                %v628 = vld [vmem:[%s624 + $0x8] sm:$0xff]
                %629 = vst [vmem:[%s625 + $0x18] sm:$0xff] %v628
                %v630 = vld [vmem:[%s624 + $0x10] sm:$0xff]
                %631 = vst [vmem:[%s625 + $0x30] sm:$0xff] %v630
                %v632 = vld [vmem:[%s624 + $0x18] sm:$0xff]
                %633 = vst [vmem:[%s625 + $0x48] sm:$0xff] %v632
                %v634 = vld [vmem:[%s624 + $0x20] sm:$0xff]
                %635 = vst [vmem:[%s625 + $0x60] sm:$0xff] %v634
                %v636 = vld [vmem:[%s624 + $0x28] sm:$0xff]
                %637 = vst [vmem:[%s625 + $0x78] sm:$0xff] %v636
                %v638 = vld [vmem:[%s624 + $0x30] sm:$0xff]
                %639 = vst [vmem:[%s625 + $0x90] sm:$0xff] %v638
                %v640 = vld [vmem:[%s624 + $0x38] sm:$0xff]
                %641 = vst [vmem:[%s625 + $0xa8] sm:$0xff] %v640
              $region91: #{forward.2} parent=85 // loop_footer
                %s623 = sadd.s32 1, %s619
              $region92: #{forward.2} parent=85 // loop_footer_branch
                %618 = sbr.rel target = $region88
              $region93: #{forward.2} parent=85 // loop_exit
                _
            $region86: #{forward.2} parent=77 // pred_fallthru
              _
          $region78: #{forward.2} parent=73 // pred_fallthru
            _
          %670 = vnop
        $region74: #{forward.2} parent=61 // pred_fallthru
          _
        // Predicated region
        $region109: #{forward.2} parent=61 // pred_check
          %p671 = pneg %p118
        $region110: #{forward.2} parent=61 // pred_check_branch
          %673 = sbr.rel (%p671) target = $region112
        $region111: #{forward.2} parent=61 // pred_region
          _
        $region112: #{forward.2} parent=61 // pred_fallthru
          _
        // Predicated region
        $region113: #{forward.2} parent=61 // pred_check
          %p674 = pneg %p139
        $region114: #{forward.2} parent=61 // pred_check_branch
          %676 = sbr.rel (%p674) target = $region116
        $region115: #{forward.2} parent=61 // pred_region
          _
        $region116: #{forward.2} parent=61 // pred_fallthru
          _
        // Predicated region
        $region117: #{forward.2} parent=61 // pred_check
          %p677 = pneg %p118
        $region118: #{forward.2} parent=61 // pred_check_branch
          %679 = sbr.rel (%p677) target = $region120
        $region119: #{forward.2} parent=61 // pred_region
          _
        $region120: #{forward.2} parent=61 // pred_fallthru
          _
        // Predicated region
        $region121: #{forward.2} parent=61 // pred_check
          %p680 = pneg %p139
        $region122: #{forward.2} parent=61 // pred_check_branch
          %682 = sbr.rel (%p680) target = $region124
        $region123: #{forward.2} parent=61 // pred_region
          _
        $region124: #{forward.2} parent=61 // pred_fallthru
          _
      $region62: #{forward.2} parent=5 // pred_fallthru
        _
      %p683 = scmp.le.s32.totalorder 2, %s11
      // Predicated region
      $region125: #{forward.2} parent=5 // pred_check
        %p684 = pneg %p683
      $region126: #{forward.2} parent=5 // pred_check_branch
        %686 = sbr.rel (%p684) target = $region128
      $region127: #{forward.2} parent=5 // pred_region
        %s687 = ssub.s32 %s11, 2
        // Predicated region
        $region129: #{forward.2} parent=127 // pred_check
          %p688 = pneg %p103
        $region130: #{forward.2} parent=127 // pred_check_branch
          %690 = sbr.rel (%p688) target = $region132
        $region131: #{forward.2} parent=127 // pred_region
          %s691 = sand.u32 %s88, 1
          %s692 = sand.u32 %s88, 1
          %s693 = smul.addr %s692, 64
          %s694 = scalar_lea.vmem [#allocation3], %s693
        $region132: #{forward.2} parent=127 // pred_fallthru
          _
      $region128: #{forward.2} parent=5 // pred_fallthru
        _
    $region6: #{forward.2} parent=1 // loop_footer
      %s15 = sadd.s32 1, %s11
    $region7: #{forward.2} parent=1 // loop_footer_branch
      %10 = sbr.rel target = $region3
    $region8: #{forward.2} parent=1 // loop_exit
      _

</llo_original>
